<compile_context>
chip_gen: v5e
topology: v5e:2x2
jax: 0.10.0
libtpu: 0.0.40
codegen_flags: <defaults>
</compile_context>

<pallas_src>
import functools

import jax
import jax.numpy as jnp
from jax import lax
from jax.experimental import pallas as pl
from jax.experimental.pallas import tpu as pltpu


def _round_up(x, m):
    return (x + m - 1) // m * m


def seq_encoder_kernel(x_ref, w_ih_ref, w_hh_ref, b_ref,
                       w_fc_ref, b_fc_ref, ln_w_ref, ln_b_ref,
                       out_ref,
                       xp_ref, h_ref, c_ref,
                       *, cs, bg, hp, seq_len, content_dim, out_pad,
                       has_tail, unroll):
    chunk = pl.program_id(1)
    n_chunks = pl.num_programs(1)

    # ---- reset carried state at the start of each batch-group's sweep ------
    @pl.when(chunk == 0)
    def _():
        h_ref[...] = jnp.zeros_like(h_ref)
        c_ref[...] = jnp.zeros_like(c_ref)

    # ---- hoisted per-chunk input projection (off the serial chain) ---------
    # x_ref block is (cs, bg, IN); one (cs*bg, IN) x (IN, 4*hp) matmul with the
    # fused (b_ih + b_hh) bias.  Its HBM DMA is double-buffered by the grid.
    x = x_ref[...].reshape(cs * bg, x_ref.shape[-1])
    xp_ref[...] = (jnp.dot(x, w_ih_ref[...],
                           preferred_element_type=jnp.float32)
                   + b_ref[...])                          # (cs*bg, 4*hp)

    w_hh = w_hh_ref[...]                                  # (hp, 4*hp) resident
    base = chunk * cs

    # ---- serial LSTM recurrence (only h @ W_hh on the critical path) -------
    def step(t, carry):
        h, c = carry
        row = pl.multiple_of(t * bg, bg)
        gates = (xp_ref[pl.ds(row, bg), :]
                 + jnp.dot(h, w_hh, preferred_element_type=jnp.float32))
        # Gate blocks are 128-lane aligned and ordered [i, f, o, g]:
        # one contiguous sigmoid over the first 3 blocks, one tanh over the last.
        sig = jax.nn.sigmoid(gates[:, 0:3 * hp])
        i_g = sig[:, 0:hp]
        f_g = sig[:, hp:2 * hp]
        o_g = sig[:, 2 * hp:3 * hp]
        g_g = jnp.tanh(gates[:, 3 * hp:4 * hp])
        c_new = f_g * c + i_g * g_g
        h_new = o_g * jnp.tanh(c_new)
        if has_tail:  # static: only traced when S % cs != 0
            valid = (base + t) < seq_len
            h_new = jnp.where(valid, h_new, h)
            c_new = jnp.where(valid, c_new, c)
        return h_new, c_new

    h_last, c_last = lax.fori_loop(0, cs, step, (h_ref[...], c_ref[...]),
                                   unroll=unroll)
    h_ref[...] = h_last
    c_ref[...] = c_last

    # ---- fc + LayerNorm(style) epilogue on the final chunk only ------------
    @pl.when(chunk == n_chunks - 1)
    def _():
        feat = (jnp.dot(h_last, w_fc_ref[...],
                        preferred_element_type=jnp.float32)
                + b_fc_ref[...])                          # (bg, E)
        style = feat[:, content_dim:]
        mean = jnp.mean(style, axis=-1, keepdims=True)
        var = jnp.mean((style - mean) ** 2, axis=-1, keepdims=True)
        style_n = ((style - mean) * lax.rsqrt(var + 1e-5)
                   * ln_w_ref[...] + ln_b_ref[...])
        pieces = [feat, style_n]
        pad = out_pad - feat.shape[-1] - style_n.shape[-1]
        if pad:
            pieces.append(jnp.zeros((feat.shape[0], pad), jnp.float32))
        # Single lane-dense (bg, out_pad) store: unmasked vst, no partial writes.
        out_ref[...] = jnp.concatenate(pieces, axis=-1)


def seq_encoder_forward(inputs, params, content_dim, *, seq_chunk=64):
    """inputs: (S, B, 2*num_keypoints) float32 (seq-major, like nn.LSTM).

    params use PyTorch layout:
      w_ih (4H, IN), w_hh (4H, H), b_ih (4H,), b_hh (4H,)   gate order i,f,g,o
      w_fc (E, H),   b_fc (E,),    ln_w (SD,), ln_b (SD,)
    Returns dict with 'features', 'content', 'style' like the module.
    """
    S, B, IN = inputs.shape
    H = params["w_hh"].shape[1]
    E = params["w_fc"].shape[0]
    SD = E - content_dim
    HP = _round_up(H, 128)               # 128-lane-aligned gate block width
    OUT_PAD = _round_up(E + SD, 128)     # lane-dense packed output width

    # Batch padding / grouping: sublane-align B and (for big batches) split it
    # into groups so a leading "parallel" grid axis can use both v7x TCs.
    B_pad = _round_up(B, 8)
    bg = B_pad if B_pad <= 256 else 256
    B_pad = _round_up(B_pad, bg)
    num_bg = B_pad // bg

    # Sequence chunking: cap the per-chunk xp scratch at ~4 MiB.
    bytes_per_step = bg * 4 * HP * 4
    cs = max(1, min(S, seq_chunk, (4 << 20) // bytes_per_step))
    num_chunks = pl.cdiv(S, cs)
    S_pad = num_chunks * cs
    has_tail = (S_pad != S)

    # ---- weight prep: gate reorder [i,f,g,o] -> [i,f,o,g] + 128-lane pad ----
    # Pad lanes carry zero weights/bias so they compute exactly 0 every step.
    def gate_pad(a, cols):
        i, f, g, o = jnp.split(a.astype(jnp.float32), 4, axis=0)
        out = jnp.zeros((4 * HP, cols), jnp.float32)
        for k, blk in enumerate([i, f, o, g]):
            out = out.at[k * HP:k * HP + H].set(blk)
        return out

    w_ih_t = gate_pad(params["w_ih"], IN).T                       # (IN, 4*HP)
    w_hh_t = jnp.zeros((HP, 4 * HP), jnp.float32).at[:H].set(
        gate_pad(params["w_hh"], H).T)                            # (HP, 4*HP)
    b = gate_pad((params["b_ih"] + params["b_hh"])[:, None], 1).T  # (1, 4*HP)
    w_fc_t = jnp.zeros((HP, E), jnp.float32).at[:H].set(params["w_fc"].T)
    b_fc = params["b_fc"].reshape(1, E).astype(jnp.float32)
    ln_w = params["ln_w"].reshape(1, SD).astype(jnp.float32)
    ln_b = params["ln_b"].reshape(1, SD).astype(jnp.float32)

    x = jnp.pad(inputs.astype(jnp.float32),
                ((0, S_pad - S), (0, B_pad - B), (0, 0)))   # (S_pad, B_pad, IN)

    kernel = functools.partial(
        seq_encoder_kernel,
        cs=cs, bg=bg, hp=HP, seq_len=S, content_dim=content_dim,
        out_pad=OUT_PAD, has_tail=has_tail, unroll=min(cs, 8))

    vmem = pl.BlockSpec(memory_space=pltpu.MemorySpace.VMEM)   # resident weights

    packed = pl.pallas_call(
        kernel,
        out_shape=jax.ShapeDtypeStruct((B_pad, OUT_PAD), jnp.float32),
        grid_spec=pltpu.PrefetchScalarGridSpec(
            num_scalar_prefetch=0,
            grid=(num_bg, num_chunks),
            in_specs=[
                pl.BlockSpec((cs, bg, IN), lambda g, c: (c, g, 0)),  # x, tiled
                vmem, vmem, vmem, vmem, vmem, vmem, vmem,            # weights
            ],
            out_specs=pl.BlockSpec((bg, OUT_PAD), lambda g, c: (g, 0)),
            scratch_shapes=[
                pltpu.VMEM((cs * bg, 4 * HP), jnp.float32),  # per-chunk x proj
                pltpu.VMEM((bg, HP), jnp.float32),           # carried h
                pltpu.VMEM((bg, HP), jnp.float32),           # carried c
            ]),
        compiler_params=pltpu.CompilerParams(
            dimension_semantics=("parallel", "arbitrary"),
            vmem_limit_bytes=32 * 1024 * 1024),
    )(x, w_ih_t, w_hh_t, b, w_fc_t, b_fc, ln_w, ln_b)

    features = packed[:B, :E]
    return {
        "features": features,
        "content": features[:, :content_dim],   # free wrapper-side slice
        "style": packed[:B, E:E + SD],
    }


def reference_forward(inputs, params, content_dim):
    """Pure-JAX reference matching PyTorch nn.LSTM / Linear / LayerNorm."""
    S, B, IN = inputs.shape
    H = params["w_hh"].shape[1]
    w_ih_t = params["w_ih"].T
    w_hh_t = params["w_hh"].T
    b = params["b_ih"] + params["b_hh"]
    h = jnp.zeros((B, H), jnp.float32)
    c = jnp.zeros((B, H), jnp.float32)
    for t in range(S):
        g = inputs[t] @ w_ih_t + h @ w_hh_t + b
        i = jax.nn.sigmoid(g[:, :H])
        f = jax.nn.sigmoid(g[:, H:2 * H])
        gg = jnp.tanh(g[:, 2 * H:3 * H])
        o = jax.nn.sigmoid(g[:, 3 * H:])
        c = f * c + i * gg
        h = o * jnp.tanh(c)
    out = h @ params["w_fc"].T + params["b_fc"]
    style = out[:, content_dim:]
    mean = jnp.mean(style, axis=-1, keepdims=True)
    var = jnp.mean((style - mean) ** 2, axis=-1, keepdims=True)
    style_n = ((style - mean) / jnp.sqrt(var + 1e-5)
               * params["ln_w"] + params["ln_b"])
    return {"features": out, "content": out[:, :content_dim], "style": style_n}


def make_params(key, num_keypoints, hidden_size, embed_size):
    """PyTorch-layout parameters (gate order i, f, g, o)."""
    IN = num_keypoints * 2
    H = hidden_size
    E = embed_size
    SD = E // 2
    ks = jax.random.split(key, 6)
    s = 1.0 / jnp.sqrt(H)
    return {
        "w_ih": jax.random.uniform(ks[0], (4 * H, IN), jnp.float32, -s, s),
        "w_hh": jax.random.uniform(ks[1], (4 * H, H), jnp.float32, -s, s),
        "b_ih": jax.random.uniform(ks[2], (4 * H,), jnp.float32, -s, s),
        "b_hh": jax.random.uniform(ks[3], (4 * H,), jnp.float32, -s, s),
        "w_fc": jax.random.uniform(ks[4], (E, H), jnp.float32, -s, s),
        "b_fc": jax.random.uniform(ks[5], (E,), jnp.float32, -s, s),
        "ln_w": jnp.ones((SD,), jnp.float32),
        "ln_b": jnp.zeros((SD,), jnp.float32),
    }


if __name__ == "__main__":
    # Small, module-consistent shapes.
    num_keypoints = 8               # -> LSTM input size 16
    hidden_size = 32
    embed_size = 32
    content_dim = embed_size // 2   # args.content_dim > 0, args.T_layer_norm > 0
    S, B = 8, 8

    key = jax.random.PRNGKey(0)
    k_in, k_par = jax.random.split(key)
    inputs = jax.random.normal(k_in, (S, B, num_keypoints * 2), jnp.float32)
    params = make_params(k_par, num_keypoints, hidden_size, embed_size)

    out = seq_encoder_forward(inputs, params, content_dim)
    out = jax.tree_util.tree_map(jax.block_until_ready, out)

    ref = reference_forward(inputs, params, content_dim)
    for name in ("features", "content", "style"):
        assert out[name].shape == ref[name].shape, name
        assert jnp.allclose(out[name], ref[name], atol=1e-5, rtol=1e-5), name

    print("KERNEL_OK")
</pallas_src>

<mosaic_0001>
module attributes {stable_mosaic.version = 11 : i64} {
  func.func @seq_encoder_kernel(%arg0: i32, %arg1: i32, %arg2: memref<8x8x16xf32, #tpu.memory_space<vmem>>, %arg3: memref<16x512xf32, #tpu.memory_space<vmem>>, %arg4: memref<128x512xf32, #tpu.memory_space<vmem>>, %arg5: memref<1x512xf32, #tpu.memory_space<vmem>>, %arg6: memref<128x32xf32, #tpu.memory_space<vmem>>, %arg7: memref<1x32xf32, #tpu.memory_space<vmem>>, %arg8: memref<1x16xf32, #tpu.memory_space<vmem>>, %arg9: memref<1x16xf32, #tpu.memory_space<vmem>>, %arg10: memref<8x128xf32, #tpu.memory_space<vmem>>, %arg11: memref<64x512xf32, #tpu.memory_space<vmem>>, %arg12: memref<8x128xf32, #tpu.memory_space<vmem>>, %arg13: memref<8x128xf32, #tpu.memory_space<vmem>>) attributes {dimension_semantics = [#tpu.dimension_semantics<parallel>, #tpu.dimension_semantics<arbitrary>], iteration_bounds = array<i64: 1, 1>, scalar_prefetch = 0 : i64, scratch_operands = 3 : i64, tpu.core_type = #tpu.core_type<tc>, window_params = [{transform_indices = @transform_0, window_bounds = array<i64: 8, 8, 16>}, {pipeline_mode = #tpu.pipeline_mode<synchronous>, transform_indices = @transform_1, window_bounds = array<i64: 16, 512>}, {pipeline_mode = #tpu.pipeline_mode<synchronous>, transform_indices = @transform_2, window_bounds = array<i64: 128, 512>}, {pipeline_mode = #tpu.pipeline_mode<synchronous>, transform_indices = @transform_3, window_bounds = array<i64: 1, 512>}, {pipeline_mode = #tpu.pipeline_mode<synchronous>, transform_indices = @transform_4, window_bounds = array<i64: 128, 32>}, {pipeline_mode = #tpu.pipeline_mode<synchronous>, transform_indices = @transform_5, window_bounds = array<i64: 1, 32>}, {pipeline_mode = #tpu.pipeline_mode<synchronous>, transform_indices = @transform_6, window_bounds = array<i64: 1, 16>}, {pipeline_mode = #tpu.pipeline_mode<synchronous>, transform_indices = @transform_7, window_bounds = array<i64: 1, 16>}, {transform_indices = @transform_8, window_bounds = array<i64: 8, 128>}]} {
    %c0_i32 = arith.constant 0 : i32
    %0 = arith.cmpi eq, %arg1, %c0_i32 : i32
    %1 = arith.extui %0 : i1 to i32
    %c0_i32_0 = arith.constant 0 : i32
    %2 = arith.cmpi ne, %1, %c0_i32_0 : i32
    scf.if %2 {
      %cst_54 = arith.constant 0.000000e+00 : f32
      %195 = vector.broadcast %cst_54 : f32 to vector<8x128xf32>
      %c0_55 = arith.constant 0 : index
      %c0_56 = arith.constant 0 : index
      %196 = vector.load %arg12[%c0_55, %c0_56] : memref<8x128xf32, #tpu.memory_space<vmem>>, vector<8x128xf32>
      tpu.vector_store %arg12[%c0_55, %c0_56], %195 {strides = array<i32>} : memref<8x128xf32, #tpu.memory_space<vmem>>, vector<8x128xf32>,
      %cst_57 = arith.constant 0.000000e+00 : f32
      %197 = vector.broadcast %cst_57 : f32 to vector<8x128xf32>
      %c0_58 = arith.constant 0 : index
      %c0_59 = arith.constant 0 : index
      %198 = vector.load %arg13[%c0_58, %c0_59] : memref<8x128xf32, #tpu.memory_space<vmem>>, vector<8x128xf32>
      tpu.vector_store %arg13[%c0_58, %c0_59], %197 {strides = array<i32>} : memref<8x128xf32, #tpu.memory_space<vmem>>, vector<8x128xf32>,
    } else {
    }
    %c0 = arith.constant 0 : index
    %c0_1 = arith.constant 0 : index
    %c0_2 = arith.constant 0 : index
    %3 = vector.load %arg2[%c0, %c0_1, %c0_2] : memref<8x8x16xf32, #tpu.memory_space<vmem>>, vector<8x8x16xf32>
    %4 = vector.shape_cast %3 : vector<8x8x16xf32> to vector<64x16xf32>
    %c0_3 = arith.constant 0 : index
    %c0_4 = arith.constant 0 : index
    %5 = vector.load %arg3[%c0_3, %c0_4] : memref<16x512xf32, #tpu.memory_space<vmem>>, vector<16x512xf32>
    %cst = arith.constant dense<0.000000e+00> : vector<64x512xf32>
    %6 = tpu.matmul %4, %5, %cst {dimension_numbers = #tpu.dot_dimension_numbers<[1], [0], [0], [1], [0, 0, 1, 1], [], []>} : vector<64x16xf32>, vector<16x512xf32>, vector<64x512xf32> -> vector<64x512xf32>
    %c0_5 = arith.constant 0 : index
    %c0_6 = arith.constant 0 : index
    %7 = vector.load %arg5[%c0_5, %c0_6] : memref<1x512xf32, #tpu.memory_space<vmem>>, vector<1x512xf32>
    %8 = vector.broadcast %7 : vector<1x512xf32> to vector<64x512xf32>
    %9 = arith.addf %6, %8 : vector<64x512xf32>
    %c0_7 = arith.constant 0 : index
    %c0_8 = arith.constant 0 : index
    %10 = vector.load %arg11[%c0_7, %c0_8] : memref<64x512xf32, #tpu.memory_space<vmem>>, vector<64x512xf32>
    tpu.vector_store %arg11[%c0_7, %c0_8], %9 {strides = array<i32>} : memref<64x512xf32, #tpu.memory_space<vmem>>, vector<64x512xf32>,
    %c0_9 = arith.constant 0 : index
    %c0_10 = arith.constant 0 : index
    %11 = vector.load %arg4[%c0_9, %c0_10] : memref<128x512xf32, #tpu.memory_space<vmem>>, vector<128x512xf32>
    %c0_11 = arith.constant 0 : index
    %c0_12 = arith.constant 0 : index
    %12 = vector.load %arg12[%c0_11, %c0_12] : memref<8x128xf32, #tpu.memory_space<vmem>>, vector<8x128xf32>
    %c0_13 = arith.constant 0 : index
    %c0_14 = arith.constant 0 : index
    %13 = vector.load %arg13[%c0_13, %c0_14] : memref<8x128xf32, #tpu.memory_space<vmem>>, vector<8x128xf32>
    %c0_i32_15 = arith.constant 0 : i32
    %c8_i32 = arith.constant 8 : i32
    %14 = arith.muli %c0_i32_15, %c8_i32 : i32
    %15 = tpu.assume_multiple %14, 8 : i32
    %16 = arith.index_cast %15 : i32 to index
    %c0_16 = arith.constant 0 : index
    %17 = vector.load %arg11[%16, %c0_16] : memref<64x512xf32, #tpu.memory_space<vmem>>, vector<8x512xf32>
    %cst_17 = arith.constant dense<0.000000e+00> : vector<8x512xf32>
    %18 = tpu.matmul %12, %11, %cst_17 {dimension_numbers = #tpu.dot_dimension_numbers<[1], [0], [0], [1], [0, 0, 1, 1], [], []>} : vector<8x128xf32>, vector<128x512xf32>, vector<8x512xf32> -> vector<8x512xf32>
    %19 = arith.addf %17, %18 : vector<8x512xf32>
    %20 = vector.extract_strided_slice %19 {offsets = [0, 0], sizes = [8, 384], strides = [1, 1]} : vector<8x512xf32> to vector<8x384xf32>
    %21 = arith.negf %20 : vector<8x384xf32>
    %22 = math.exp %21 : vector<8x384xf32>
    %cst_18 = arith.constant 1.000000e+00 : f32
    %23 = vector.broadcast %cst_18 : f32 to vector<8x384xf32>
    %24 = arith.addf %23, %22 : vector<8x384xf32>
    %25 = arith.divf %23, %24 : vector<8x384xf32>
    %26 = vector.extract_strided_slice %25 {offsets = [0, 0], sizes = [8, 128], strides = [1, 1]} : vector<8x384xf32> to vector<8x128xf32>
    %27 = vector.extract_strided_slice %25 {offsets = [0, 128], sizes = [8, 128], strides = [1, 1]} : vector<8x384xf32> to vector<8x128xf32>
    %28 = vector.extract_strided_slice %25 {offsets = [0, 256], sizes = [8, 128], strides = [1, 1]} : vector<8x384xf32> to vector<8x128xf32>
    %29 = vector.extract_strided_slice %19 {offsets = [0, 384], sizes = [8, 128], strides = [1, 1]} : vector<8x512xf32> to vector<8x128xf32>
    %30 = math.tanh %29 : vector<8x128xf32>
    %31 = arith.mulf %27, %13 : vector<8x128xf32>
    %32 = arith.mulf %26, %30 : vector<8x128xf32>
    %33 = arith.addf %31, %32 : vector<8x128xf32>
    %34 = math.tanh %33 : vector<8x128xf32>
    %35 = arith.mulf %28, %34 : vector<8x128xf32>
    %c1_i32 = arith.constant 1 : i32
    %c8_i32_19 = arith.constant 8 : i32
    %36 = arith.muli %c1_i32, %c8_i32_19 : i32
    %37 = tpu.assume_multiple %36, 8 : i32
    %38 = arith.index_cast %37 : i32 to index
    %c0_20 = arith.constant 0 : index
    %39 = vector.load %arg11[%38, %c0_20] : memref<64x512xf32, #tpu.memory_space<vmem>>, vector<8x512xf32>
    %cst_21 = arith.constant dense<0.000000e+00> : vector<8x512xf32>
    %40 = tpu.matmul %35, %11, %cst_21 {dimension_numbers = #tpu.dot_dimension_numbers<[1], [0], [0], [1], [0, 0, 1, 1], [], []>} : vector<8x128xf32>, vector<128x512xf32>, vector<8x512xf32> -> vector<8x512xf32>
    %41 = arith.addf %39, %40 : vector<8x512xf32>
    %42 = vector.extract_strided_slice %41 {offsets = [0, 0], sizes = [8, 384], strides = [1, 1]} : vector<8x512xf32> to vector<8x384xf32>
    %43 = arith.negf %42 : vector<8x384xf32>
    %44 = math.exp %43 : vector<8x384xf32>
    %cst_22 = arith.constant 1.000000e+00 : f32
    %45 = vector.broadcast %cst_22 : f32 to vector<8x384xf32>
    %46 = arith.addf %45, %44 : vector<8x384xf32>
    %47 = arith.divf %45, %46 : vector<8x384xf32>
    %48 = vector.extract_strided_slice %47 {offsets = [0, 0], sizes = [8, 128], strides = [1, 1]} : vector<8x384xf32> to vector<8x128xf32>
    %49 = vector.extract_strided_slice %47 {offsets = [0, 128], sizes = [8, 128], strides = [1, 1]} : vector<8x384xf32> to vector<8x128xf32>
    %50 = vector.extract_strided_slice %47 {offsets = [0, 256], sizes = [8, 128], strides = [1, 1]} : vector<8x384xf32> to vector<8x128xf32>
    %51 = vector.extract_strided_slice %41 {offsets = [0, 384], sizes = [8, 128], strides = [1, 1]} : vector<8x512xf32> to vector<8x128xf32>
    %52 = math.tanh %51 : vector<8x128xf32>
    %53 = arith.mulf %49, %33 : vector<8x128xf32>
    %54 = arith.mulf %48, %52 : vector<8x128xf32>
    %55 = arith.addf %53, %54 : vector<8x128xf32>
    %56 = math.tanh %55 : vector<8x128xf32>
    %57 = arith.mulf %50, %56 : vector<8x128xf32>
    %c2_i32 = arith.constant 2 : i32
    %c8_i32_23 = arith.constant 8 : i32
    %58 = arith.muli %c2_i32, %c8_i32_23 : i32
    %59 = tpu.assume_multiple %58, 8 : i32
    %60 = arith.index_cast %59 : i32 to index
    %c0_24 = arith.constant 0 : index
    %61 = vector.load %arg11[%60, %c0_24] : memref<64x512xf32, #tpu.memory_space<vmem>>, vector<8x512xf32>
    %cst_25 = arith.constant dense<0.000000e+00> : vector<8x512xf32>
    %62 = tpu.matmul %57, %11, %cst_25 {dimension_numbers = #tpu.dot_dimension_numbers<[1], [0], [0], [1], [0, 0, 1, 1], [], []>} : vector<8x128xf32>, vector<128x512xf32>, vector<8x512xf32> -> vector<8x512xf32>
    %63 = arith.addf %61, %62 : vector<8x512xf32>
    %64 = vector.extract_strided_slice %63 {offsets = [0, 0], sizes = [8, 384], strides = [1, 1]} : vector<8x512xf32> to vector<8x384xf32>
    %65 = arith.negf %64 : vector<8x384xf32>
    %66 = math.exp %65 : vector<8x384xf32>
    %cst_26 = arith.constant 1.000000e+00 : f32
    %67 = vector.broadcast %cst_26 : f32 to vector<8x384xf32>
    %68 = arith.addf %67, %66 : vector<8x384xf32>
    %69 = arith.divf %67, %68 : vector<8x384xf32>
    %70 = vector.extract_strided_slice %69 {offsets = [0, 0], sizes = [8, 128], strides = [1, 1]} : vector<8x384xf32> to vector<8x128xf32>
    %71 = vector.extract_strided_slice %69 {offsets = [0, 128], sizes = [8, 128], strides = [1, 1]} : vector<8x384xf32> to vector<8x128xf32>
    %72 = vector.extract_strided_slice %69 {offsets = [0, 256], sizes = [8, 128], strides = [1, 1]} : vector<8x384xf32> to vector<8x128xf32>
    %73 = vector.extract_strided_slice %63 {offsets = [0, 384], sizes = [8, 128], strides = [1, 1]} : vector<8x512xf32> to vector<8x128xf32>
    %74 = math.tanh %73 : vector<8x128xf32>
    %75 = arith.mulf %71, %55 : vector<8x128xf32>
    %76 = arith.mulf %70, %74 : vector<8x128xf32>
    %77 = arith.addf %75, %76 : vector<8x128xf32>
    %78 = math.tanh %77 : vector<8x128xf32>
    %79 = arith.mulf %72, %78 : vector<8x128xf32>
    %c3_i32 = arith.constant 3 : i32
    %c8_i32_27 = arith.constant 8 : i32
    %80 = arith.muli %c3_i32, %c8_i32_27 : i32
    %81 = tpu.assume_multiple %80, 8 : i32
    %82 = arith.index_cast %81 : i32 to index
    %c0_28 = arith.constant 0 : index
    %83 = vector.load %arg11[%82, %c0_28] : memref<64x512xf32, #tpu.memory_space<vmem>>, vector<8x512xf32>
    %cst_29 = arith.constant dense<0.000000e+00> : vector<8x512xf32>
    %84 = tpu.matmul %79, %11, %cst_29 {dimension_numbers = #tpu.dot_dimension_numbers<[1], [0], [0], [1], [0, 0, 1, 1], [], []>} : vector<8x128xf32>, vector<128x512xf32>, vector<8x512xf32> -> vector<8x512xf32>
    %85 = arith.addf %83, %84 : vector<8x512xf32>
    %86 = vector.extract_strided_slice %85 {offsets = [0, 0], sizes = [8, 384], strides = [1, 1]} : vector<8x512xf32> to vector<8x384xf32>
    %87 = arith.negf %86 : vector<8x384xf32>
    %88 = math.exp %87 : vector<8x384xf32>
    %cst_30 = arith.constant 1.000000e+00 : f32
    %89 = vector.broadcast %cst_30 : f32 to vector<8x384xf32>
    %90 = arith.addf %89, %88 : vector<8x384xf32>
    %91 = arith.divf %89, %90 : vector<8x384xf32>
    %92 = vector.extract_strided_slice %91 {offsets = [0, 0], sizes = [8, 128], strides = [1, 1]} : vector<8x384xf32> to vector<8x128xf32>
    %93 = vector.extract_strided_slice %91 {offsets = [0, 128], sizes = [8, 128], strides = [1, 1]} : vector<8x384xf32> to vector<8x128xf32>
    %94 = vector.extract_strided_slice %91 {offsets = [0, 256], sizes = [8, 128], strides = [1, 1]} : vector<8x384xf32> to vector<8x128xf32>
    %95 = vector.extract_strided_slice %85 {offsets = [0, 384], sizes = [8, 128], strides = [1, 1]} : vector<8x512xf32> to vector<8x128xf32>
    %96 = math.tanh %95 : vector<8x128xf32>
    %97 = arith.mulf %93, %77 : vector<8x128xf32>
    %98 = arith.mulf %92, %96 : vector<8x128xf32>
    %99 = arith.addf %97, %98 : vector<8x128xf32>
    %100 = math.tanh %99 : vector<8x128xf32>
    %101 = arith.mulf %94, %100 : vector<8x128xf32>
    %c4_i32 = arith.constant 4 : i32
    %c8_i32_31 = arith.constant 8 : i32
    %102 = arith.muli %c4_i32, %c8_i32_31 : i32
    %103 = tpu.assume_multiple %102, 8 : i32
    %104 = arith.index_cast %103 : i32 to index
    %c0_32 = arith.constant 0 : index
    %105 = vector.load %arg11[%104, %c0_32] : memref<64x512xf32, #tpu.memory_space<vmem>>, vector<8x512xf32>
    %cst_33 = arith.constant dense<0.000000e+00> : vector<8x512xf32>
    %106 = tpu.matmul %101, %11, %cst_33 {dimension_numbers = #tpu.dot_dimension_numbers<[1], [0], [0], [1], [0, 0, 1, 1], [], []>} : vector<8x128xf32>, vector<128x512xf32>, vector<8x512xf32> -> vector<8x512xf32>
    %107 = arith.addf %105, %106 : vector<8x512xf32>
    %108 = vector.extract_strided_slice %107 {offsets = [0, 0], sizes = [8, 384], strides = [1, 1]} : vector<8x512xf32> to vector<8x384xf32>
    %109 = arith.negf %108 : vector<8x384xf32>
    %110 = math.exp %109 : vector<8x384xf32>
    %cst_34 = arith.constant 1.000000e+00 : f32
    %111 = vector.broadcast %cst_34 : f32 to vector<8x384xf32>
    %112 = arith.addf %111, %110 : vector<8x384xf32>
    %113 = arith.divf %111, %112 : vector<8x384xf32>
    %114 = vector.extract_strided_slice %113 {offsets = [0, 0], sizes = [8, 128], strides = [1, 1]} : vector<8x384xf32> to vector<8x128xf32>
    %115 = vector.extract_strided_slice %113 {offsets = [0, 128], sizes = [8, 128], strides = [1, 1]} : vector<8x384xf32> to vector<8x128xf32>
    %116 = vector.extract_strided_slice %113 {offsets = [0, 256], sizes = [8, 128], strides = [1, 1]} : vector<8x384xf32> to vector<8x128xf32>
    %117 = vector.extract_strided_slice %107 {offsets = [0, 384], sizes = [8, 128], strides = [1, 1]} : vector<8x512xf32> to vector<8x128xf32>
    %118 = math.tanh %117 : vector<8x128xf32>
    %119 = arith.mulf %115, %99 : vector<8x128xf32>
    %120 = arith.mulf %114, %118 : vector<8x128xf32>
    %121 = arith.addf %119, %120 : vector<8x128xf32>
    %122 = math.tanh %121 : vector<8x128xf32>
    %123 = arith.mulf %116, %122 : vector<8x128xf32>
    %c5_i32 = arith.constant 5 : i32
    %c8_i32_35 = arith.constant 8 : i32
    %124 = arith.muli %c5_i32, %c8_i32_35 : i32
    %125 = tpu.assume_multiple %124, 8 : i32
    %126 = arith.index_cast %125 : i32 to index
    %c0_36 = arith.constant 0 : index
    %127 = vector.load %arg11[%126, %c0_36] : memref<64x512xf32, #tpu.memory_space<vmem>>, vector<8x512xf32>
    %cst_37 = arith.constant dense<0.000000e+00> : vector<8x512xf32>
    %128 = tpu.matmul %123, %11, %cst_37 {dimension_numbers = #tpu.dot_dimension_numbers<[1], [0], [0], [1], [0, 0, 1, 1], [], []>} : vector<8x128xf32>, vector<128x512xf32>, vector<8x512xf32> -> vector<8x512xf32>
    %129 = arith.addf %127, %128 : vector<8x512xf32>
    %130 = vector.extract_strided_slice %129 {offsets = [0, 0], sizes = [8, 384], strides = [1, 1]} : vector<8x512xf32> to vector<8x384xf32>
    %131 = arith.negf %130 : vector<8x384xf32>
    %132 = math.exp %131 : vector<8x384xf32>
    %cst_38 = arith.constant 1.000000e+00 : f32
    %133 = vector.broadcast %cst_38 : f32 to vector<8x384xf32>
    %134 = arith.addf %133, %132 : vector<8x384xf32>
    %135 = arith.divf %133, %134 : vector<8x384xf32>
    %136 = vector.extract_strided_slice %135 {offsets = [0, 0], sizes = [8, 128], strides = [1, 1]} : vector<8x384xf32> to vector<8x128xf32>
    %137 = vector.extract_strided_slice %135 {offsets = [0, 128], sizes = [8, 128], strides = [1, 1]} : vector<8x384xf32> to vector<8x128xf32>
    %138 = vector.extract_strided_slice %135 {offsets = [0, 256], sizes = [8, 128], strides = [1, 1]} : vector<8x384xf32> to vector<8x128xf32>
    %139 = vector.extract_strided_slice %129 {offsets = [0, 384], sizes = [8, 128], strides = [1, 1]} : vector<8x512xf32> to vector<8x128xf32>
    %140 = math.tanh %139 : vector<8x128xf32>
    %141 = arith.mulf %137, %121 : vector<8x128xf32>
    %142 = arith.mulf %136, %140 : vector<8x128xf32>
    %143 = arith.addf %141, %142 : vector<8x128xf32>
    %144 = math.tanh %143 : vector<8x128xf32>
    %145 = arith.mulf %138, %144 : vector<8x128xf32>
    %c6_i32 = arith.constant 6 : i32
    %c8_i32_39 = arith.constant 8 : i32
    %146 = arith.muli %c6_i32, %c8_i32_39 : i32
    %147 = tpu.assume_multiple %146, 8 : i32
    %148 = arith.index_cast %147 : i32 to index
    %c0_40 = arith.constant 0 : index
    %149 = vector.load %arg11[%148, %c0_40] : memref<64x512xf32, #tpu.memory_space<vmem>>, vector<8x512xf32>
    %cst_41 = arith.constant dense<0.000000e+00> : vector<8x512xf32>
    %150 = tpu.matmul %145, %11, %cst_41 {dimension_numbers = #tpu.dot_dimension_numbers<[1], [0], [0], [1], [0, 0, 1, 1], [], []>} : vector<8x128xf32>, vector<128x512xf32>, vector<8x512xf32> -> vector<8x512xf32>
    %151 = arith.addf %149, %150 : vector<8x512xf32>
    %152 = vector.extract_strided_slice %151 {offsets = [0, 0], sizes = [8, 384], strides = [1, 1]} : vector<8x512xf32> to vector<8x384xf32>
    %153 = arith.negf %152 : vector<8x384xf32>
    %154 = math.exp %153 : vector<8x384xf32>
    %cst_42 = arith.constant 1.000000e+00 : f32
    %155 = vector.broadcast %cst_42 : f32 to vector<8x384xf32>
    %156 = arith.addf %155, %154 : vector<8x384xf32>
    %157 = arith.divf %155, %156 : vector<8x384xf32>
    %158 = vector.extract_strided_slice %157 {offsets = [0, 0], sizes = [8, 128], strides = [1, 1]} : vector<8x384xf32> to vector<8x128xf32>
    %159 = vector.extract_strided_slice %157 {offsets = [0, 128], sizes = [8, 128], strides = [1, 1]} : vector<8x384xf32> to vector<8x128xf32>
    %160 = vector.extract_strided_slice %157 {offsets = [0, 256], sizes = [8, 128], strides = [1, 1]} : vector<8x384xf32> to vector<8x128xf32>
    %161 = vector.extract_strided_slice %151 {offsets = [0, 384], sizes = [8, 128], strides = [1, 1]} : vector<8x512xf32> to vector<8x128xf32>
    %162 = math.tanh %161 : vector<8x128xf32>
    %163 = arith.mulf %159, %143 : vector<8x128xf32>
    %164 = arith.mulf %158, %162 : vector<8x128xf32>
    %165 = arith.addf %163, %164 : vector<8x128xf32>
    %166 = math.tanh %165 : vector<8x128xf32>
    %167 = arith.mulf %160, %166 : vector<8x128xf32>
    %c7_i32 = arith.constant 7 : i32
    %c8_i32_43 = arith.constant 8 : i32
    %168 = arith.muli %c7_i32, %c8_i32_43 : i32
    %169 = tpu.assume_multiple %168, 8 : i32
    %170 = arith.index_cast %169 : i32 to index
    %c0_44 = arith.constant 0 : index
    %171 = vector.load %arg11[%170, %c0_44] : memref<64x512xf32, #tpu.memory_space<vmem>>, vector<8x512xf32>
    %cst_45 = arith.constant dense<0.000000e+00> : vector<8x512xf32>
    %172 = tpu.matmul %167, %11, %cst_45 {dimension_numbers = #tpu.dot_dimension_numbers<[1], [0], [0], [1], [0, 0, 1, 1], [], []>} : vector<8x128xf32>, vector<128x512xf32>, vector<8x512xf32> -> vector<8x512xf32>
    %173 = arith.addf %171, %172 : vector<8x512xf32>
    %174 = vector.extract_strided_slice %173 {offsets = [0, 0], sizes = [8, 384], strides = [1, 1]} : vector<8x512xf32> to vector<8x384xf32>
    %175 = arith.negf %174 : vector<8x384xf32>
    %176 = math.exp %175 : vector<8x384xf32>
    %cst_46 = arith.constant 1.000000e+00 : f32
    %177 = vector.broadcast %cst_46 : f32 to vector<8x384xf32>
    %178 = arith.addf %177, %176 : vector<8x384xf32>
    %179 = arith.divf %177, %178 : vector<8x384xf32>
    %180 = vector.extract_strided_slice %179 {offsets = [0, 0], sizes = [8, 128], strides = [1, 1]} : vector<8x384xf32> to vector<8x128xf32>
    %181 = vector.extract_strided_slice %179 {offsets = [0, 128], sizes = [8, 128], strides = [1, 1]} : vector<8x384xf32> to vector<8x128xf32>
    %182 = vector.extract_strided_slice %179 {offsets = [0, 256], sizes = [8, 128], strides = [1, 1]} : vector<8x384xf32> to vector<8x128xf32>
    %183 = vector.extract_strided_slice %173 {offsets = [0, 384], sizes = [8, 128], strides = [1, 1]} : vector<8x512xf32> to vector<8x128xf32>
    %184 = math.tanh %183 : vector<8x128xf32>
    %185 = arith.mulf %181, %165 : vector<8x128xf32>
    %186 = arith.mulf %180, %184 : vector<8x128xf32>
    %187 = arith.addf %185, %186 : vector<8x128xf32>
    %188 = math.tanh %187 : vector<8x128xf32>
    %189 = arith.mulf %182, %188 : vector<8x128xf32>
    %c8_i32_47 = arith.constant 8 : i32
    %c0_48 = arith.constant 0 : index
    %c0_49 = arith.constant 0 : index
    %190 = vector.load %arg12[%c0_48, %c0_49] : memref<8x128xf32, #tpu.memory_space<vmem>>, vector<8x128xf32>
    tpu.vector_store %arg12[%c0_48, %c0_49], %189 {strides = array<i32>} : memref<8x128xf32, #tpu.memory_space<vmem>>, vector<8x128xf32>,
    %c0_50 = arith.constant 0 : index
    %c0_51 = arith.constant 0 : index
    %191 = vector.load %arg13[%c0_50, %c0_51] : memref<8x128xf32, #tpu.memory_space<vmem>>, vector<8x128xf32>
    tpu.vector_store %arg13[%c0_50, %c0_51], %187 {strides = array<i32>} : memref<8x128xf32, #tpu.memory_space<vmem>>, vector<8x128xf32>,
    %c0_i32_52 = arith.constant 0 : i32
    %192 = arith.cmpi eq, %arg1, %c0_i32_52 : i32
    %193 = arith.extui %192 : i1 to i32
    %c0_i32_53 = arith.constant 0 : i32
    %194 = arith.cmpi ne, %193, %c0_i32_53 : i32
    scf.if %194 {
      %c0_54 = arith.constant 0 : index
      %c0_55 = arith.constant 0 : index
      %195 = vector.load %arg6[%c0_54, %c0_55] : memref<128x32xf32, #tpu.memory_space<vmem>>, vector<128x32xf32>
      %cst_56 = arith.constant dense<0.000000e+00> : vector<8x32xf32>
      %196 = tpu.matmul %189, %195, %cst_56 {dimension_numbers = #tpu.dot_dimension_numbers<[1], [0], [0], [1], [0, 0, 1, 1], [], []>} : vector<8x128xf32>, vector<128x32xf32>, vector<8x32xf32> -> vector<8x32xf32>
      %c0_57 = arith.constant 0 : index
      %c0_58 = arith.constant 0 : index
      %197 = vector.load %arg7[%c0_57, %c0_58] : memref<1x32xf32, #tpu.memory_space<vmem>>, vector<1x32xf32>
      %198 = vector.broadcast %197 : vector<1x32xf32> to vector<8x32xf32>
      %199 = arith.addf %196, %198 : vector<8x32xf32>
      %200 = vector.extract_strided_slice %199 {offsets = [0, 16], sizes = [8, 16], strides = [1, 1]} : vector<8x32xf32> to vector<8x16xf32>
      %cst_59 = arith.constant dense<0.000000e+00> : vector<8xf32>
      %201 = vector.multi_reduction <add>, %200, %cst_59 [1] : vector<8x16xf32> to vector<8xf32>
      %202 = vector.shape_cast %201 : vector<8xf32> to vector<8x1xf32>
      %cst_60 = arith.constant 1.600000e+01 : f32
      %203 = vector.broadcast %cst_60 : f32 to vector<8x1xf32>
      %204 = arith.divf %202, %203 : vector<8x1xf32>
      %205 = vector.broadcast %204 : vector<8x1xf32> to vector<8x16xf32>
      %206 = arith.subf %200, %205 : vector<8x16xf32>
      %207 = arith.mulf %206, %206 : vector<8x16xf32>
      %cst_61 = arith.constant dense<0.000000e+00> : vector<8xf32>
      %208 = vector.multi_reduction <add>, %207, %cst_61 [1] : vector<8x16xf32> to vector<8xf32>
      %209 = vector.shape_cast %208 : vector<8xf32> to vector<8x1xf32>
      %cst_62 = arith.constant 1.600000e+01 : f32
      %210 = vector.broadcast %cst_62 : f32 to vector<8x1xf32>
      %211 = arith.divf %209, %210 : vector<8x1xf32>
      %212 = vector.broadcast %204 : vector<8x1xf32> to vector<8x16xf32>
      %213 = arith.subf %200, %212 : vector<8x16xf32>
      %cst_63 = arith.constant 9.99999974E-6 : f32
      %214 = vector.broadcast %cst_63 : f32 to vector<8x1xf32>
      %215 = arith.addf %211, %214 : vector<8x1xf32>
      %216 = math.rsqrt %215 : vector<8x1xf32>
      %217 = vector.broadcast %216 : vector<8x1xf32> to vector<8x16xf32>
      %218 = arith.mulf %213, %217 : vector<8x16xf32>
      %c0_64 = arith.constant 0 : index
      %c0_65 = arith.constant 0 : index
      %219 = vector.load %arg8[%c0_64, %c0_65] : memref<1x16xf32, #tpu.memory_space<vmem>>, vector<1x16xf32>
      %220 = vector.broadcast %219 : vector<1x16xf32> to vector<8x16xf32>
      %221 = arith.mulf %218, %220 : vector<8x16xf32>
      %c0_66 = arith.constant 0 : index
      %c0_67 = arith.constant 0 : index
      %222 = vector.load %arg9[%c0_66, %c0_67] : memref<1x16xf32, #tpu.memory_space<vmem>>, vector<1x16xf32>
      %223 = vector.broadcast %222 : vector<1x16xf32> to vector<8x16xf32>
      %224 = arith.addf %221, %223 : vector<8x16xf32>
      %cst_68 = arith.constant 0.000000e+00 : f32
      %225 = vector.broadcast %cst_68 : f32 to vector<8x80xf32>
      %226 = tpu.concatenate %199, %224, %225 in 1 : vector<8x32xf32>, vector<8x16xf32>, vector<8x80xf32> -> vector<8x128xf32>
      %c0_69 = arith.constant 0 : index
      %c0_70 = arith.constant 0 : index
      %227 = vector.load %arg10[%c0_69, %c0_70] : memref<8x128xf32, #tpu.memory_space<vmem>>, vector<8x128xf32>
      tpu.vector_store %arg10[%c0_69, %c0_70], %226 {strides = array<i32>} : memref<8x128xf32, #tpu.memory_space<vmem>>, vector<8x128xf32>,
    } else {
    }
    return
  }
  func.func @transform_0(%arg0: i32, %arg1: i32) -> (i32, i32, i32) {
    %c0_i32 = arith.constant 0 : i32
    %c0_i32_0 = arith.constant 0 : i32
    return %arg1, %arg0, %c0_i32 : i32, i32, i32
  }
  func.func @transform_1(%arg0: i32, %arg1: i32) -> (i32, i32) {
    %c0_i32 = arith.constant 0 : i32
    %c0_i32_0 = arith.constant 0 : i32
    %c0_i32_1 = arith.constant 0 : i32
    return %c0_i32, %c0_i32_0 : i32, i32
  }
  func.func @transform_2(%arg0: i32, %arg1: i32) -> (i32, i32) {
    %c0_i32 = arith.constant 0 : i32
    %c0_i32_0 = arith.constant 0 : i32
    %c0_i32_1 = arith.constant 0 : i32
    return %c0_i32, %c0_i32_0 : i32, i32
  }
  func.func @transform_3(%arg0: i32, %arg1: i32) -> (i32, i32) {
    %c0_i32 = arith.constant 0 : i32
    %c0_i32_0 = arith.constant 0 : i32
    %c0_i32_1 = arith.constant 0 : i32
    return %c0_i32, %c0_i32_0 : i32, i32
  }
  func.func @transform_4(%arg0: i32, %arg1: i32) -> (i32, i32) {
    %c0_i32 = arith.constant 0 : i32
    %c0_i32_0 = arith.constant 0 : i32
    %c0_i32_1 = arith.constant 0 : i32
    return %c0_i32, %c0_i32_0 : i32, i32
  }
  func.func @transform_5(%arg0: i32, %arg1: i32) -> (i32, i32) {
    %c0_i32 = arith.constant 0 : i32
    %c0_i32_0 = arith.constant 0 : i32
    %c0_i32_1 = arith.constant 0 : i32
    return %c0_i32, %c0_i32_0 : i32, i32
  }
  func.func @transform_6(%arg0: i32, %arg1: i32) -> (i32, i32) {
    %c0_i32 = arith.constant 0 : i32
    %c0_i32_0 = arith.constant 0 : i32
    %c0_i32_1 = arith.constant 0 : i32
    return %c0_i32, %c0_i32_0 : i32, i32
  }
  func.func @transform_7(%arg0: i32, %arg1: i32) -> (i32, i32) {
    %c0_i32 = arith.constant 0 : i32
    %c0_i32_0 = arith.constant 0 : i32
    %c0_i32_1 = arith.constant 0 : i32
    return %c0_i32, %c0_i32_0 : i32, i32
  }
  func.func @transform_8(%arg0: i32, %arg1: i32) -> (i32, i32) {
    %c0_i32 = arith.constant 0 : i32
    %c0_i32_0 = arith.constant 0 : i32
    return %arg0, %c0_i32 : i32, i32
  }
}

</mosaic_0001>

<llo_original>
// kernel: tpu_custom_call.1
$region0: #{tpu_custom_call.1}
  #allocation0 [shape = 'u32[]', space=smem, size = 0x4, offset = 0x4, fixed_abs, tag = 'smem constant byte address 0x4 - core index']
  #allocation1 [shape = 'u32[72,128]{1,0:T(1,128)}', space=vmem, size = 0x9000, scoped, tag = 'internal scratch']
  #allocation2 [shape = 'f32[64,512]{1,0:T(8,128)}', space=vmem, size = 0x20000, scoped, tag = 'scratch operand']
  #allocation3 [shape = 'f32[8,128]{1,0:T(8,128)}', space=vmem, size = 0x1000, scoped, tag = 'scratch operand']
  #allocation4 [shape = 'f32[8,128]{1,0:T(8,128)}', space=vmem, size = 0x1000, scoped, tag = 'scratch operand']
  %s0 = inlined_call_operand.vmem [shape: f32[8,8,16], index: 0, kind: input, shape index: {}]
  %s1 = inlined_call_operand.vmem [shape: f32[16,512], index: 1, kind: input, shape index: {}]
  %s2 = inlined_call_operand.hbm [shape: f32[128,512], index: 2, kind: input, shape index: {}]
  %s3 = inlined_call_operand.vmem [shape: f32[1,512], index: 3, kind: input, shape index: {}]
  %s4 = inlined_call_operand.vmem [shape: f32[128,32], index: 4, kind: input, shape index: {}]
  %s5 = inlined_call_operand.vmem [shape: f32[1,32], index: 5, kind: input, shape index: {}]
  %s6 = inlined_call_operand.vmem [shape: f32[1,16], index: 6, kind: input, shape index: {}]
  %s7 = inlined_call_operand.vmem [shape: f32[1,16], index: 7, kind: input, shape index: {}]
  %s8 = inlined_call_operand.hbm [shape: f32[8,128], index: 8, kind: output, shape index: {}]
  %s9 = sld [smem:[#allocation0]]
  $region54: #{tpu_custom_call.1} parent=0
    _
  %s11 = ssub.s32 1, %s9
  %s12 = scalar_select 0, %s11, %s9
  $region1: #{tpu_custom_call.1} parent=0
    #allocation5 [shape = 'u8[262144]{0}', space=vmem, size = 0x40000, scoped, tag = 'input window, operand 2, single buffered']
    #allocation6 [shape = 's32[1]{0}', space=sflag, size = 0x4, scoped, tag = 'scoped memory for tpu_custom_call.1']
    #allocation7 [shape = 's32[1]{0}', space=sflag, size = 0x4, scoped, tag = 'scoped memory for tpu_custom_call.1']
    #allocation8 [shape = 'u8[4096]{0}', space=vmem, size = 0x1000, scoped, tag = 'output window, operand 0, single buffered']
    %13 = vsyncpa [#allocation6], 0
    %14 = vsyncpa [#allocation7], 0
    // Predicated region
    $region2: #{tpu_custom_call.1} parent=1 // pred_check
      _
    $region3: #{tpu_custom_call.1} parent=1 // pred_check_branch
      %16 = sbr.rel (0) target = $region5
    $region4: #{tpu_custom_call.1} parent=1 // pred_region
      _
    $region5: #{tpu_custom_call.1} parent=1 // pred_fallthru
      _
    // Predicated region
    $region6: #{tpu_custom_call.1} parent=1 // pred_check
      _
    $region7: #{tpu_custom_call.1} parent=1 // pred_check_branch
      %18 = sbr.rel (0) target = $region9
    $region8: #{tpu_custom_call.1} parent=1 // pred_region
      _
    $region9: #{tpu_custom_call.1} parent=1 // pred_fallthru
      _
    // Predicated region
    $region10: #{tpu_custom_call.1} parent=1 // pred_check
      _
    $region11: #{tpu_custom_call.1} parent=1 // pred_check_branch
      %20 = sbr.rel (0) target = $region13
    $region12: #{tpu_custom_call.1} parent=1 // pred_region
      %22 = vsyncadd [#allocation6], 0
      %s23 = sshll.u32 %s2, 4
      %s24 = int_to_ptr.hbm [resolvable:$true] %s23
      %s25 = sshll.u32 [#allocation5], 4
      %s26 = int_to_ptr.vmem [resolvable:$true] %s25
      %31 = dma.hbm_to_vmem [thread:$0]  %s24, 8192, %s26, [#allocation6], 512, 512, 32
    $region13: #{tpu_custom_call.1} parent=1 // pred_fallthru
      _
    // Predicated region
    $region14: #{tpu_custom_call.1} parent=1 // pred_check
      _
    $region15: #{tpu_custom_call.1} parent=1 // pred_check_branch
      %33 = sbr.rel (0) target = $region17
    $region16: #{tpu_custom_call.1} parent=1 // pred_region
      _
    $region17: #{tpu_custom_call.1} parent=1 // pred_fallthru
      _
    // Predicated region
    $region18: #{tpu_custom_call.1} parent=1 // pred_check
      _
    $region19: #{tpu_custom_call.1} parent=1 // pred_check_branch
      %35 = sbr.rel (0) target = $region21
    $region20: #{tpu_custom_call.1} parent=1 // pred_region
      _
    $region21: #{tpu_custom_call.1} parent=1 // pred_fallthru
      _
    // Predicated region
    $region22: #{tpu_custom_call.1} parent=1 // pred_check
      _
    $region23: #{tpu_custom_call.1} parent=1 // pred_check_branch
      %37 = sbr.rel (0) target = $region25
    $region24: #{tpu_custom_call.1} parent=1 // pred_region
      _
    $region25: #{tpu_custom_call.1} parent=1 // pred_fallthru
      _
    // Predicated region
    $region26: #{tpu_custom_call.1} parent=1 // pred_check
      _
    $region27: #{tpu_custom_call.1} parent=1 // pred_check_branch
      %39 = sbr.rel (0) target = $region29
    $region28: #{tpu_custom_call.1} parent=1 // pred_region
      _
    $region29: #{tpu_custom_call.1} parent=1 // pred_fallthru
      _
    // Predicated region
    $region30: #{tpu_custom_call.1} parent=1 // pred_check
      _
    $region31: #{tpu_custom_call.1} parent=1 // pred_check_branch
      %41 = sbr.rel (0) target = $region33
    $region32: #{tpu_custom_call.1} parent=1 // pred_region
      _
    $region33: #{tpu_custom_call.1} parent=1 // pred_fallthru
      _
    // Predicated region
    $region34: #{tpu_custom_call.1} parent=1 // pred_check
      _
    $region35: #{tpu_custom_call.1} parent=1 // pred_check_branch
      %43 = sbr.rel (0) target = $region37
    $region36: #{tpu_custom_call.1} parent=1 // pred_region
      %45 = dma.done [#allocation6], 8192
    $region37: #{tpu_custom_call.1} parent=1 // pred_fallthru
      _
    %p46 = scmp.eq.s32.totalorder 0, 0
    // Predicated region
    $region38: #{tpu_custom_call.1} parent=1 // pred_check
      %p47 = pneg %p46
    $region39: #{tpu_custom_call.1} parent=1 // pred_check_branch
      %49 = sbr.rel (%p47) target = $region41
    $region40: #{tpu_custom_call.1} parent=1 // pred_region
      %50 = vst [vmem:[#allocation3] sm:$0xff] 0.0
      %51 = vst [vmem:[#allocation4] sm:$0xff] 0.0
    $region41: #{tpu_custom_call.1} parent=1 // pred_fallthru
      _
    %v52 = vld [vmem:[%s0] sm:$0xff]
    %v53 = vld [vmem:[%s0 + $0x8] sm:$0xff]
    %v54 = vld [vmem:[%s0 + $0x10] sm:$0xff]
    %v55 = vld [vmem:[%s0 + $0x18] sm:$0xff]
    %v56 = vld [vmem:[%s0 + $0x20] sm:$0xff]
    %v57 = vld [vmem:[%s0 + $0x28] sm:$0xff]
    %v58 = vld [vmem:[%s0 + $0x30] sm:$0xff]
    %v59 = vld [vmem:[%s0 + $0x38] sm:$0xff]
    %v60 = vld [vmem:[%s1] sm:$0xff]
    %v61 = vld [vmem:[%s1 + $0x8] sm:$0xff]
    %v62 = vld [vmem:[%s1 + $0x10] sm:$0xff]
    %v63 = vld [vmem:[%s1 + $0x18] sm:$0xff]
    %v64 = vld [vmem:[%s1 + $0x20] sm:$0xff]
    %v65 = vld [vmem:[%s1 + $0x28] sm:$0xff]
    %v66 = vld [vmem:[%s1 + $0x30] sm:$0xff]
    %v67 = vld [vmem:[%s1 + $0x38] sm:$0xff]
    %v68 = vld [vmem:[%s3] sm:$0xf]
    %v70 = vperm.slane %v68, 0
    %v71 = vperm.slane %v68, 1
    %v72 = vperm.slane %v68, 2
    %v73 = vperm.slane %v68, 3
    %vm78 = vcmask 130048
    %v80 = vsel %vm78, %v52, 0
    %v83 = vsel %vm78, %v53, 0
    %v86 = vsel %vm78, %v54, 0
    %v89 = vsel %vm78, %v55, 0
    %v92 = vsel %vm78, %v56, 0
    %v95 = vsel %vm78, %v57, 0
    %v98 = vsel %vm78, %v58, 0
    %v101 = vsel %vm78, %v59, 0
    %103 = vmatpush.msra.mxu0 0.0
    %104 = vmatpush.msra.mxu0 0.0
    %105 = vmatpush.msra.mxu0 0.0
    %106 = vmatpush.msra.mxu0 0.0
    %107 = vmatpush.msra.mxu0 0.0
    %108 = vmatpush.msra.mxu0 0.0
    %109 = vmatpush.msra.mxu0 0.0
    %110 = vmatpush.msra.mxu0 0.0
    %111 = vmatpush.msra.mxu0 0.0
    %112 = vmatpush.msra.mxu0 0.0
    %113 = vmatpush.msra.mxu0 0.0
    %114 = vmatpush.msra.mxu0 0.0
    %115 = vmatpush.msra.mxu0 0.0
    %116 = vmatpush.msra.mxu0 0.0
    %117 = vmatpush.msra.mxu0 %v64
    %118 = vmatpush.msra.mxu0 %v60
    %119 = vmatmul.f32.gmra.mxu0 %v80
    %v120 = vpop.f32.mrf.mxu0
    %v121 = vadd.f32 %v70, %v120
    %122 = vmatmul.f32.gmra.mxu0 %v83
    %v123 = vpop.f32.mrf.mxu0
    %v124 = vadd.f32 %v70, %v123
    %125 = vmatmul.f32.gmra.mxu0 %v86
    %v126 = vpop.f32.mrf.mxu0
    %v127 = vadd.f32 %v70, %v126
    %128 = vmatmul.f32.gmra.mxu0 %v89
    %v129 = vpop.f32.mrf.mxu0
    %v130 = vadd.f32 %v70, %v129
    %131 = vmatmul.f32.gmra.mxu0 %v92
    %v132 = vpop.f32.mrf.mxu0
    %v133 = vadd.f32 %v70, %v132
    %134 = vmatmul.f32.gmra.mxu0 %v95
    %v135 = vpop.f32.mrf.mxu0
    %v136 = vadd.f32 %v70, %v135
    %137 = vmatmul.f32.gmra.mxu0 %v98
    %v138 = vpop.f32.mrf.mxu0
    %v139 = vadd.f32 %v70, %v138
    %140 = vmatmul.f32.gmra.mxu0 %v101
    %v141 = vpop.f32.mrf.mxu0
    %v142 = vadd.f32 %v70, %v141
    %143 = vdwg.mxu0
    %144 = vmatpush.msra.mxu0 0.0
    %145 = vmatpush.msra.mxu0 0.0
    %146 = vmatpush.msra.mxu0 0.0
    %147 = vmatpush.msra.mxu0 0.0
    %148 = vmatpush.msra.mxu0 0.0
    %149 = vmatpush.msra.mxu0 0.0
    %150 = vmatpush.msra.mxu0 0.0
    %151 = vmatpush.msra.mxu0 0.0
    %152 = vmatpush.msra.mxu0 0.0
    %153 = vmatpush.msra.mxu0 0.0
    %154 = vmatpush.msra.mxu0 0.0
    %155 = vmatpush.msra.mxu0 0.0
    %156 = vmatpush.msra.mxu0 0.0
    %157 = vmatpush.msra.mxu0 0.0
    %158 = vmatpush.msra.mxu0 %v65
    %159 = vmatpush.msra.mxu0 %v61
    %160 = vmatmul.f32.gmra.mxu0 %v80
    %v161 = vpop.f32.mrf.mxu0
    %v162 = vadd.f32 %v71, %v161
    %163 = vmatmul.f32.gmra.mxu0 %v83
    %v164 = vpop.f32.mrf.mxu0
    %v165 = vadd.f32 %v71, %v164
    %166 = vmatmul.f32.gmra.mxu0 %v86
    %v167 = vpop.f32.mrf.mxu0
    %v168 = vadd.f32 %v71, %v167
    %169 = vmatmul.f32.gmra.mxu0 %v89
    %v170 = vpop.f32.mrf.mxu0
    %v171 = vadd.f32 %v71, %v170
    %172 = vmatmul.f32.gmra.mxu0 %v92
    %v173 = vpop.f32.mrf.mxu0
    %v174 = vadd.f32 %v71, %v173
    %175 = vmatmul.f32.gmra.mxu0 %v95
    %v176 = vpop.f32.mrf.mxu0
    %v177 = vadd.f32 %v71, %v176
    %178 = vmatmul.f32.gmra.mxu0 %v98
    %v179 = vpop.f32.mrf.mxu0
    %v180 = vadd.f32 %v71, %v179
    %181 = vmatmul.f32.gmra.mxu0 %v101
    %v182 = vpop.f32.mrf.mxu0
    %v183 = vadd.f32 %v71, %v182
    %184 = vdwg.mxu0
    %185 = vmatpush.msra.mxu0 0.0
    %186 = vmatpush.msra.mxu0 0.0
    %187 = vmatpush.msra.mxu0 0.0
    %188 = vmatpush.msra.mxu0 0.0
    %189 = vmatpush.msra.mxu0 0.0
    %190 = vmatpush.msra.mxu0 0.0
    %191 = vmatpush.msra.mxu0 0.0
    %192 = vmatpush.msra.mxu0 0.0
    %193 = vmatpush.msra.mxu0 0.0
    %194 = vmatpush.msra.mxu0 0.0
    %195 = vmatpush.msra.mxu0 0.0
    %196 = vmatpush.msra.mxu0 0.0
    %197 = vmatpush.msra.mxu0 0.0
    %198 = vmatpush.msra.mxu0 0.0
    %199 = vmatpush.msra.mxu0 %v66
    %200 = vmatpush.msra.mxu0 %v62
    %201 = vmatmul.f32.gmra.mxu0 %v80
    %v202 = vpop.f32.mrf.mxu0
    %v203 = vadd.f32 %v72, %v202
    %204 = vmatmul.f32.gmra.mxu0 %v83
    %v205 = vpop.f32.mrf.mxu0
    %v206 = vadd.f32 %v72, %v205
    %207 = vmatmul.f32.gmra.mxu0 %v86
    %v208 = vpop.f32.mrf.mxu0
    %v209 = vadd.f32 %v72, %v208
    %210 = vmatmul.f32.gmra.mxu0 %v89
    %v211 = vpop.f32.mrf.mxu0
    %v212 = vadd.f32 %v72, %v211
    %213 = vmatmul.f32.gmra.mxu0 %v92
    %v214 = vpop.f32.mrf.mxu0
    %v215 = vadd.f32 %v72, %v214
    %216 = vmatmul.f32.gmra.mxu0 %v95
    %v217 = vpop.f32.mrf.mxu0
    %v218 = vadd.f32 %v72, %v217
    %219 = vmatmul.f32.gmra.mxu0 %v98
    %v220 = vpop.f32.mrf.mxu0
    %v221 = vadd.f32 %v72, %v220
    %222 = vmatmul.f32.gmra.mxu0 %v101
    %v223 = vpop.f32.mrf.mxu0
    %v224 = vadd.f32 %v72, %v223
    %225 = vdwg.mxu0
    %226 = vmatpush.msra.mxu0 0.0
    %227 = vmatpush.msra.mxu0 0.0
    %228 = vmatpush.msra.mxu0 0.0
    %229 = vmatpush.msra.mxu0 0.0
    %230 = vmatpush.msra.mxu0 0.0
    %231 = vmatpush.msra.mxu0 0.0
    %232 = vmatpush.msra.mxu0 0.0
    %233 = vmatpush.msra.mxu0 0.0
    %234 = vmatpush.msra.mxu0 0.0
    %235 = vmatpush.msra.mxu0 0.0
    %236 = vmatpush.msra.mxu0 0.0
    %237 = vmatpush.msra.mxu0 0.0
    %238 = vmatpush.msra.mxu0 0.0
    %239 = vmatpush.msra.mxu0 0.0
    %240 = vmatpush.msra.mxu0 %v67
    %241 = vmatpush.msra.mxu0 %v63
    %242 = vmatmul.f32.gmra.mxu0 %v80
    %v243 = vpop.f32.mrf.mxu0
    %v244 = vadd.f32 %v73, %v243
    %245 = vmatmul.f32.gmra.mxu0 %v83
    %v246 = vpop.f32.mrf.mxu0
    %v247 = vadd.f32 %v73, %v246
    %248 = vmatmul.f32.gmra.mxu0 %v86
    %v249 = vpop.f32.mrf.mxu0
    %v250 = vadd.f32 %v73, %v249
    %251 = vmatmul.f32.gmra.mxu0 %v89
    %v252 = vpop.f32.mrf.mxu0
    %v253 = vadd.f32 %v73, %v252
    %254 = vmatmul.f32.gmra.mxu0 %v92
    %v255 = vpop.f32.mrf.mxu0
    %v256 = vadd.f32 %v73, %v255
    %257 = vmatmul.f32.gmra.mxu0 %v95
    %v258 = vpop.f32.mrf.mxu0
    %v259 = vadd.f32 %v73, %v258
    %260 = vmatmul.f32.gmra.mxu0 %v98
    %v261 = vpop.f32.mrf.mxu0
    %v262 = vadd.f32 %v73, %v261
    %263 = vmatmul.f32.gmra.mxu0 %v101
    %v264 = vpop.f32.mrf.mxu0
    %v265 = vadd.f32 %v73, %v264
    %266 = vdwg.mxu0
    %267 = vst [vmem:[#allocation2] sm:$0xff] %v121
    %268 = vst [vmem:[#allocation2 + $0x8] sm:$0xff] %v162
    %269 = vst [vmem:[#allocation2 + $0x10] sm:$0xff] %v203
    %270 = vst [vmem:[#allocation2 + $0x18] sm:$0xff] %v244
    %271 = vst [vmem:[#allocation2 + $0x20] sm:$0xff] %v124
    %272 = vst [vmem:[#allocation2 + $0x28] sm:$0xff] %v165
    %273 = vst [vmem:[#allocation2 + $0x30] sm:$0xff] %v206
    %274 = vst [vmem:[#allocation2 + $0x38] sm:$0xff] %v247
    %275 = vst [vmem:[#allocation2 + $0x40] sm:$0xff] %v127
    %276 = vst [vmem:[#allocation2 + $0x48] sm:$0xff] %v168
    %277 = vst [vmem:[#allocation2 + $0x50] sm:$0xff] %v209
    %278 = vst [vmem:[#allocation2 + $0x58] sm:$0xff] %v250
    %279 = vst [vmem:[#allocation2 + $0x60] sm:$0xff] %v130
    %280 = vst [vmem:[#allocation2 + $0x68] sm:$0xff] %v171
    %281 = vst [vmem:[#allocation2 + $0x70] sm:$0xff] %v212
    %282 = vst [vmem:[#allocation2 + $0x78] sm:$0xff] %v253
    %283 = vst [vmem:[#allocation2 + $0x80] sm:$0xff] %v133
    %284 = vst [vmem:[#allocation2 + $0x88] sm:$0xff] %v174
    %285 = vst [vmem:[#allocation2 + $0x90] sm:$0xff] %v215
    %286 = vst [vmem:[#allocation2 + $0x98] sm:$0xff] %v256
    %287 = vst [vmem:[#allocation2 + $0xa0] sm:$0xff] %v136
    %288 = vst [vmem:[#allocation2 + $0xa8] sm:$0xff] %v177
    %289 = vst [vmem:[#allocation2 + $0xb0] sm:$0xff] %v218
    %290 = vst [vmem:[#allocation2 + $0xb8] sm:$0xff] %v259
    %291 = vst [vmem:[#allocation2 + $0xc0] sm:$0xff] %v139
    %292 = vst [vmem:[#allocation2 + $0xc8] sm:$0xff] %v180
    %293 = vst [vmem:[#allocation2 + $0xd0] sm:$0xff] %v221
    %294 = vst [vmem:[#allocation2 + $0xd8] sm:$0xff] %v262
    %295 = vst [vmem:[#allocation2 + $0xe0] sm:$0xff] %v142
    %296 = vst [vmem:[#allocation2 + $0xe8] sm:$0xff] %v183
    %297 = vst [vmem:[#allocation2 + $0xf0] sm:$0xff] %v224
    %298 = vst [vmem:[#allocation2 + $0xf8] sm:$0xff] %v265
    %v299 = vld [vmem:[#allocation5] sm:$0xff]
    %v300 = vld [vmem:[#allocation5 + $0x8] sm:$0xff]
    %v301 = vld [vmem:[#allocation5 + $0x10] sm:$0xff]
    %v302 = vld [vmem:[#allocation5 + $0x18] sm:$0xff]
    %v303 = vld [vmem:[#allocation5 + $0x20] sm:$0xff]
    %v304 = vld [vmem:[#allocation5 + $0x28] sm:$0xff]
    %v305 = vld [vmem:[#allocation5 + $0x30] sm:$0xff]
    %v306 = vld [vmem:[#allocation5 + $0x38] sm:$0xff]
    %v307 = vld [vmem:[#allocation5 + $0x40] sm:$0xff]
    %v308 = vld [vmem:[#allocation5 + $0x48] sm:$0xff]
    %v309 = vld [vmem:[#allocation5 + $0x50] sm:$0xff]
    %v310 = vld [vmem:[#allocation5 + $0x58] sm:$0xff]
    %v311 = vld [vmem:[#allocation5 + $0x60] sm:$0xff]
    %v312 = vld [vmem:[#allocation5 + $0x68] sm:$0xff]
    %v313 = vld [vmem:[#allocation5 + $0x70] sm:$0xff]
    %v314 = vld [vmem:[#allocation5 + $0x78] sm:$0xff]
    %v315 = vld [vmem:[#allocation5 + $0x80] sm:$0xff]
    %v316 = vld [vmem:[#allocation5 + $0x88] sm:$0xff]
    %v317 = vld [vmem:[#allocation5 + $0x90] sm:$0xff]
    %v318 = vld [vmem:[#allocation5 + $0x98] sm:$0xff]
    %v319 = vld [vmem:[#allocation5 + $0xa0] sm:$0xff]
    %v320 = vld [vmem:[#allocation5 + $0xa8] sm:$0xff]
    %v321 = vld [vmem:[#allocation5 + $0xb0] sm:$0xff]
    %v322 = vld [vmem:[#allocation5 + $0xb8] sm:$0xff]
    %v323 = vld [vmem:[#allocation5 + $0xc0] sm:$0xff]
    %v324 = vld [vmem:[#allocation5 + $0xc8] sm:$0xff]
    %v325 = vld [vmem:[#allocation5 + $0xd0] sm:$0xff]
    %v326 = vld [vmem:[#allocation5 + $0xd8] sm:$0xff]
    %v327 = vld [vmem:[#allocation5 + $0xe0] sm:$0xff]
    %v328 = vld [vmem:[#allocation5 + $0xe8] sm:$0xff]
    %v329 = vld [vmem:[#allocation5 + $0xf0] sm:$0xff]
    %v330 = vld [vmem:[#allocation5 + $0xf8] sm:$0xff]
    %v331 = vld [vmem:[#allocation5 + $0x100] sm:$0xff]
    %v332 = vld [vmem:[#allocation5 + $0x108] sm:$0xff]
    %v333 = vld [vmem:[#allocation5 + $0x110] sm:$0xff]
    %v334 = vld [vmem:[#allocation5 + $0x118] sm:$0xff]
    %v335 = vld [vmem:[#allocation5 + $0x120] sm:$0xff]
    %v336 = vld [vmem:[#allocation5 + $0x128] sm:$0xff]
    %v337 = vld [vmem:[#allocation5 + $0x130] sm:$0xff]
    %v338 = vld [vmem:[#allocation5 + $0x138] sm:$0xff]
    %v339 = vld [vmem:[#allocation5 + $0x140] sm:$0xff]
    %v340 = vld [vmem:[#allocation5 + $0x148] sm:$0xff]
    %v341 = vld [vmem:[#allocation5 + $0x150] sm:$0xff]
    %v342 = vld [vmem:[#allocation5 + $0x158] sm:$0xff]
    %v343 = vld [vmem:[#allocation5 + $0x160] sm:$0xff]
    %v344 = vld [vmem:[#allocation5 + $0x168] sm:$0xff]
    %v345 = vld [vmem:[#allocation5 + $0x170] sm:$0xff]
    %v346 = vld [vmem:[#allocation5 + $0x178] sm:$0xff]
    %v347 = vld [vmem:[#allocation5 + $0x180] sm:$0xff]
    %v348 = vld [vmem:[#allocation5 + $0x188] sm:$0xff]
    %v349 = vld [vmem:[#allocation5 + $0x190] sm:$0xff]
    %v350 = vld [vmem:[#allocation5 + $0x198] sm:$0xff]
    %v351 = vld [vmem:[#allocation5 + $0x1a0] sm:$0xff]
    %v352 = vld [vmem:[#allocation5 + $0x1a8] sm:$0xff]
    %v353 = vld [vmem:[#allocation5 + $0x1b0] sm:$0xff]
    %v354 = vld [vmem:[#allocation5 + $0x1b8] sm:$0xff]
    %v355 = vld [vmem:[#allocation5 + $0x1c0] sm:$0xff]
    %v356 = vld [vmem:[#allocation5 + $0x1c8] sm:$0xff]
    %v357 = vld [vmem:[#allocation5 + $0x1d0] sm:$0xff]
    %v358 = vld [vmem:[#allocation5 + $0x1d8] sm:$0xff]
    %v359 = vld [vmem:[#allocation5 + $0x1e0] sm:$0xff]
    %v360 = vld [vmem:[#allocation5 + $0x1e8] sm:$0xff]
    %v361 = vld [vmem:[#allocation5 + $0x1f0] sm:$0xff]
    %v362 = vld [vmem:[#allocation5 + $0x1f8] sm:$0xff]
    %v363 = vld [vmem:[#allocation3] sm:$0xff]
    %v364 = vld [vmem:[#allocation4] sm:$0xff]
    %s365 = smul.u32 0, 4
    %s366 = smul.addr %s365, 8
    %s367 = scalar_lea.vmem [#allocation2], %s366
    %v368 = vld [vmem:[%s367] sm:$0xff]
    %v369 = vld [vmem:[%s367 + $0x8] sm:$0xff]
    %v370 = vld [vmem:[%s367 + $0x10] sm:$0xff]
    %v371 = vld [vmem:[%s367 + $0x18] sm:$0xff]
    %372 = vmatpush.msra.mxu0 %v359
    %373 = vmatpush.msra.mxu0 %v355
    %374 = vmatpush.msra.mxu0 %v351
    %375 = vmatpush.msra.mxu0 %v347
    %376 = vmatpush.msra.mxu0 %v343
    %377 = vmatpush.msra.mxu0 %v339
    %378 = vmatpush.msra.mxu0 %v335
    %379 = vmatpush.msra.mxu0 %v331
    %380 = vmatpush.msra.mxu0 %v327
    %381 = vmatpush.msra.mxu0 %v323
    %382 = vmatpush.msra.mxu0 %v319
    %383 = vmatpush.msra.mxu0 %v315
    %384 = vmatpush.msra.mxu0 %v311
    %385 = vmatpush.msra.mxu0 %v307
    %386 = vmatpush.msra.mxu0 %v303
    %387 = vmatpush.msra.mxu0 %v299
    %388 = vmatmul.f32.gmra.mxu0 %v363
    %v389 = vpop.f32.mrf.mxu0
    %v390 = vadd.f32 0.0, %v389
    %391 = vdwg.mxu0
    %392 = vmatpush.msra.mxu0 %v360
    %393 = vmatpush.msra.mxu0 %v356
    %394 = vmatpush.msra.mxu0 %v352
    %395 = vmatpush.msra.mxu0 %v348
    %396 = vmatpush.msra.mxu0 %v344
    %397 = vmatpush.msra.mxu0 %v340
    %398 = vmatpush.msra.mxu0 %v336
    %399 = vmatpush.msra.mxu0 %v332
    %400 = vmatpush.msra.mxu0 %v328
    %401 = vmatpush.msra.mxu0 %v324
    %402 = vmatpush.msra.mxu0 %v320
    %403 = vmatpush.msra.mxu0 %v316
    %404 = vmatpush.msra.mxu0 %v312
    %405 = vmatpush.msra.mxu0 %v308
    %406 = vmatpush.msra.mxu0 %v304
    %407 = vmatpush.msra.mxu0 %v300
    %408 = vmatmul.f32.gmra.mxu0 %v363
    %v409 = vpop.f32.mrf.mxu0
    %v410 = vadd.f32 0.0, %v409
    %411 = vdwg.mxu0
    %412 = vmatpush.msra.mxu0 %v361
    %413 = vmatpush.msra.mxu0 %v357
    %414 = vmatpush.msra.mxu0 %v353
    %415 = vmatpush.msra.mxu0 %v349
    %416 = vmatpush.msra.mxu0 %v345
    %417 = vmatpush.msra.mxu0 %v341
    %418 = vmatpush.msra.mxu0 %v337
    %419 = vmatpush.msra.mxu0 %v333
    %420 = vmatpush.msra.mxu0 %v329
    %421 = vmatpush.msra.mxu0 %v325
    %422 = vmatpush.msra.mxu0 %v321
    %423 = vmatpush.msra.mxu0 %v317
    %424 = vmatpush.msra.mxu0 %v313
    %425 = vmatpush.msra.mxu0 %v309
    %426 = vmatpush.msra.mxu0 %v305
    %427 = vmatpush.msra.mxu0 %v301
    %428 = vmatmul.f32.gmra.mxu0 %v363
    %v429 = vpop.f32.mrf.mxu0
    %v430 = vadd.f32 0.0, %v429
    %431 = vdwg.mxu0
    %432 = vmatpush.msra.mxu0 %v362
    %433 = vmatpush.msra.mxu0 %v358
    %434 = vmatpush.msra.mxu0 %v354
    %435 = vmatpush.msra.mxu0 %v350
    %436 = vmatpush.msra.mxu0 %v346
    %437 = vmatpush.msra.mxu0 %v342
    %438 = vmatpush.msra.mxu0 %v338
    %439 = vmatpush.msra.mxu0 %v334
    %440 = vmatpush.msra.mxu0 %v330
    %441 = vmatpush.msra.mxu0 %v326
    %442 = vmatpush.msra.mxu0 %v322
    %443 = vmatpush.msra.mxu0 %v318
    %444 = vmatpush.msra.mxu0 %v314
    %445 = vmatpush.msra.mxu0 %v310
    %446 = vmatpush.msra.mxu0 %v306
    %447 = vmatpush.msra.mxu0 %v302
    %448 = vmatmul.f32.gmra.mxu0 %v363
    %v449 = vpop.f32.mrf.mxu0
    %v450 = vadd.f32 0.0, %v449
    %451 = vdwg.mxu0
    %v452 = vadd.f32 %v368, %v390
    %v453 = vadd.f32 %v369, %v410
    %v454 = vadd.f32 %v370, %v430
    %v455 = vadd.f32 %v371, %v450
    %v456 = vxor.u32 %v452, 2147483648
    %v457 = vxor.u32 %v453, 2147483648
    %v458 = vxor.u32 %v454, 2147483648
    %v459 = vmul.f32 %v456, 1.442695
    %v460 = vpow.pop %v459
    %v461 = vmul.f32 %v457, 1.442695
    %v462 = vpow.pop %v461
    %v463 = vmul.f32 %v458, 1.442695
    %v464 = vpow.pop %v463
    %v465 = vadd.f32 %v460, 1.0
    %v466 = vadd.f32 %v462, 1.0
    %v467 = vadd.f32 %v464, 1.0
    %v468 = vrcp.pop %v465
    %v469 = vmul.f32 %v465, %v468
    %v470 = vsub.f32 1.0, %v469
    %v471 = vmul.f32 %v468, %v470
    %v472 = vadd.f32 %v468, %v471
    %vm473 = vweird.f32 %v465
    %vm474 = vweird.f32 %v468
    %vm475 = vmor %vm473, %vm474
    %v476 = vsel %vm475, %v468, %v472
    %v477 = vand.u32 2147483647, %v465
    %vm478 = vcmp.eq.f32.partialorder %v477, 8.507059e+37
    %v479 = vand.u32 %v465, 2147483648
    %v480 = vor.u32 1.1754944e-38, %v479
    %v481 = vsel %vm478, %v480, %v476
    %v482 = vmul.f32 1.0, %v481
    %v483 = vrcp.pop %v466
    %v484 = vmul.f32 %v466, %v483
    %v485 = vsub.f32 1.0, %v484
    %v486 = vmul.f32 %v483, %v485
    %v487 = vadd.f32 %v483, %v486
    %vm488 = vweird.f32 %v466
    %vm489 = vweird.f32 %v483
    %vm490 = vmor %vm488, %vm489
    %v491 = vsel %vm490, %v483, %v487
    %v492 = vand.u32 2147483647, %v466
    %vm493 = vcmp.eq.f32.partialorder %v492, 8.507059e+37
    %v494 = vand.u32 %v466, 2147483648
    %v495 = vor.u32 1.1754944e-38, %v494
    %v496 = vsel %vm493, %v495, %v491
    %v497 = vmul.f32 1.0, %v496
    %v498 = vrcp.pop %v467
    %v499 = vmul.f32 %v467, %v498
    %v500 = vsub.f32 1.0, %v499
    %v501 = vmul.f32 %v498, %v500
    %v502 = vadd.f32 %v498, %v501
    %vm503 = vweird.f32 %v467
    %vm504 = vweird.f32 %v498
    %vm505 = vmor %vm503, %vm504
    %v506 = vsel %vm505, %v498, %v502
    %v507 = vand.u32 2147483647, %v467
    %vm508 = vcmp.eq.f32.partialorder %v507, 8.507059e+37
    %v509 = vand.u32 %v467, 2147483648
    %v510 = vor.u32 1.1754944e-38, %v509
    %v511 = vsel %vm508, %v510, %v506
    %v512 = vmul.f32 1.0, %v511
    %v513 = vtanh.pop %v455
    %v514 = vmul.f32 %v497, %v364
    %v515 = vmul.f32 %v482, %v513
    %v516 = vadd.f32 %v514, %v515
    %v517 = vtanh.pop %v516
    %v518 = vmul.f32 %v512, %v517
    %s519 = smul.u32 1, 4
    %s520 = smul.addr %s519, 8
    %s521 = scalar_lea.vmem [#allocation2], %s520
    %v522 = vld [vmem:[%s521] sm:$0xff]
    %v523 = vld [vmem:[%s521 + $0x8] sm:$0xff]
    %v524 = vld [vmem:[%s521 + $0x10] sm:$0xff]
    %v525 = vld [vmem:[%s521 + $0x18] sm:$0xff]
    %526 = vmatpush.msra.mxu0 %v359
    %527 = vmatpush.msra.mxu0 %v355
    %528 = vmatpush.msra.mxu0 %v351
    %529 = vmatpush.msra.mxu0 %v347
    %530 = vmatpush.msra.mxu0 %v343
    %531 = vmatpush.msra.mxu0 %v339
    %532 = vmatpush.msra.mxu0 %v335
    %533 = vmatpush.msra.mxu0 %v331
    %534 = vmatpush.msra.mxu0 %v327
    %535 = vmatpush.msra.mxu0 %v323
    %536 = vmatpush.msra.mxu0 %v319
    %537 = vmatpush.msra.mxu0 %v315
    %538 = vmatpush.msra.mxu0 %v311
    %539 = vmatpush.msra.mxu0 %v307
    %540 = vmatpush.msra.mxu0 %v303
    %541 = vmatpush.msra.mxu0 %v299
    %542 = vmatmul.f32.gmra.mxu0 %v518
    %v543 = vpop.f32.mrf.mxu0
    %v544 = vadd.f32 0.0, %v543
    %545 = vdwg.mxu0
    %546 = vmatpush.msra.mxu0 %v360
    %547 = vmatpush.msra.mxu0 %v356
    %548 = vmatpush.msra.mxu0 %v352
    %549 = vmatpush.msra.mxu0 %v348
    %550 = vmatpush.msra.mxu0 %v344
    %551 = vmatpush.msra.mxu0 %v340
    %552 = vmatpush.msra.mxu0 %v336
    %553 = vmatpush.msra.mxu0 %v332
    %554 = vmatpush.msra.mxu0 %v328
    %555 = vmatpush.msra.mxu0 %v324
    %556 = vmatpush.msra.mxu0 %v320
    %557 = vmatpush.msra.mxu0 %v316
    %558 = vmatpush.msra.mxu0 %v312
    %559 = vmatpush.msra.mxu0 %v308
    %560 = vmatpush.msra.mxu0 %v304
    %561 = vmatpush.msra.mxu0 %v300
    %562 = vmatmul.f32.gmra.mxu0 %v518
    %v563 = vpop.f32.mrf.mxu0
    %v564 = vadd.f32 0.0, %v563
    %565 = vdwg.mxu0
    %566 = vmatpush.msra.mxu0 %v361
    %567 = vmatpush.msra.mxu0 %v357
    %568 = vmatpush.msra.mxu0 %v353
    %569 = vmatpush.msra.mxu0 %v349
    %570 = vmatpush.msra.mxu0 %v345
    %571 = vmatpush.msra.mxu0 %v341
    %572 = vmatpush.msra.mxu0 %v337
    %573 = vmatpush.msra.mxu0 %v333
    %574 = vmatpush.msra.mxu0 %v329
    %575 = vmatpush.msra.mxu0 %v325
    %576 = vmatpush.msra.mxu0 %v321
    %577 = vmatpush.msra.mxu0 %v317
    %578 = vmatpush.msra.mxu0 %v313
    %579 = vmatpush.msra.mxu0 %v309
    %580 = vmatpush.msra.mxu0 %v305
    %581 = vmatpush.msra.mxu0 %v301
    %582 = vmatmul.f32.gmra.mxu0 %v518
    %v583 = vpop.f32.mrf.mxu0
    %v584 = vadd.f32 0.0, %v583
    %585 = vdwg.mxu0
    %586 = vmatpush.msra.mxu0 %v362
    %587 = vmatpush.msra.mxu0 %v358
    %588 = vmatpush.msra.mxu0 %v354
    %589 = vmatpush.msra.mxu0 %v350
    %590 = vmatpush.msra.mxu0 %v346
    %591 = vmatpush.msra.mxu0 %v342
    %592 = vmatpush.msra.mxu0 %v338
    %593 = vmatpush.msra.mxu0 %v334
    %594 = vmatpush.msra.mxu0 %v330
    %595 = vmatpush.msra.mxu0 %v326
    %596 = vmatpush.msra.mxu0 %v322
    %597 = vmatpush.msra.mxu0 %v318
    %598 = vmatpush.msra.mxu0 %v314
    %599 = vmatpush.msra.mxu0 %v310
    %600 = vmatpush.msra.mxu0 %v306
    %601 = vmatpush.msra.mxu0 %v302
    %602 = vmatmul.f32.gmra.mxu0 %v518
    %v603 = vpop.f32.mrf.mxu0
    %v604 = vadd.f32 0.0, %v603
    %605 = vdwg.mxu0
    %v606 = vadd.f32 %v522, %v544
    %v607 = vadd.f32 %v523, %v564
    %v608 = vadd.f32 %v524, %v584
    %v609 = vadd.f32 %v525, %v604
    %v610 = vxor.u32 %v606, 2147483648
    %v611 = vxor.u32 %v607, 2147483648
    %v612 = vxor.u32 %v608, 2147483648
    %v613 = vmul.f32 %v610, 1.442695
    %v614 = vpow.pop %v613
    %v615 = vmul.f32 %v611, 1.442695
    %v616 = vpow.pop %v615
    %v617 = vmul.f32 %v612, 1.442695
    %v618 = vpow.pop %v617
    %v619 = vadd.f32 %v614, 1.0
    %v620 = vadd.f32 %v616, 1.0
    %v621 = vadd.f32 %v618, 1.0
    %v622 = vrcp.pop %v619
    %v623 = vmul.f32 %v619, %v622
    %v624 = vsub.f32 1.0, %v623
    %v625 = vmul.f32 %v622, %v624
    %v626 = vadd.f32 %v622, %v625
    %vm627 = vweird.f32 %v619
    %vm628 = vweird.f32 %v622
    %vm629 = vmor %vm627, %vm628
    %v630 = vsel %vm629, %v622, %v626
    %v631 = vand.u32 2147483647, %v619
    %vm632 = vcmp.eq.f32.partialorder %v631, 8.507059e+37
    %v633 = vand.u32 %v619, 2147483648
    %v634 = vor.u32 1.1754944e-38, %v633
    %v635 = vsel %vm632, %v634, %v630
    %v636 = vmul.f32 1.0, %v635
    %v637 = vrcp.pop %v620
    %v638 = vmul.f32 %v620, %v637
    %v639 = vsub.f32 1.0, %v638
    %v640 = vmul.f32 %v637, %v639
    %v641 = vadd.f32 %v637, %v640
    %vm642 = vweird.f32 %v620
    %vm643 = vweird.f32 %v637
    %vm644 = vmor %vm642, %vm643
    %v645 = vsel %vm644, %v637, %v641
    %v646 = vand.u32 2147483647, %v620
    %vm647 = vcmp.eq.f32.partialorder %v646, 8.507059e+37
    %v648 = vand.u32 %v620, 2147483648
    %v649 = vor.u32 1.1754944e-38, %v648
    %v650 = vsel %vm647, %v649, %v645
    %v651 = vmul.f32 1.0, %v650
    %v652 = vrcp.pop %v621
    %v653 = vmul.f32 %v621, %v652
    %v654 = vsub.f32 1.0, %v653
    %v655 = vmul.f32 %v652, %v654
    %v656 = vadd.f32 %v652, %v655
    %vm657 = vweird.f32 %v621
    %vm658 = vweird.f32 %v652
    %vm659 = vmor %vm657, %vm658
    %v660 = vsel %vm659, %v652, %v656
    %v661 = vand.u32 2147483647, %v621
    %vm662 = vcmp.eq.f32.partialorder %v661, 8.507059e+37
    %v663 = vand.u32 %v621, 2147483648
    %v664 = vor.u32 1.1754944e-38, %v663
    %v665 = vsel %vm662, %v664, %v660
    %v666 = vmul.f32 1.0, %v665
    %v667 = vtanh.pop %v609
    %v668 = vmul.f32 %v651, %v516
    %v669 = vmul.f32 %v636, %v667
    %v670 = vadd.f32 %v668, %v669
    %v671 = vtanh.pop %v670
    %v672 = vmul.f32 %v666, %v671
    %s673 = smul.u32 2, 4
    %s674 = smul.addr %s673, 8
    %s675 = scalar_lea.vmem [#allocation2], %s674
    %v676 = vld [vmem:[%s675] sm:$0xff]
    %v677 = vld [vmem:[%s675 + $0x8] sm:$0xff]
    %v678 = vld [vmem:[%s675 + $0x10] sm:$0xff]
    %v679 = vld [vmem:[%s675 + $0x18] sm:$0xff]
    %680 = vmatpush.msra.mxu0 %v359
    %681 = vmatpush.msra.mxu0 %v355
    %682 = vmatpush.msra.mxu0 %v351
    %683 = vmatpush.msra.mxu0 %v347
    %684 = vmatpush.msra.mxu0 %v343
    %685 = vmatpush.msra.mxu0 %v339
    %686 = vmatpush.msra.mxu0 %v335
    %687 = vmatpush.msra.mxu0 %v331
    %688 = vmatpush.msra.mxu0 %v327
    %689 = vmatpush.msra.mxu0 %v323
    %690 = vmatpush.msra.mxu0 %v319
    %691 = vmatpush.msra.mxu0 %v315
    %692 = vmatpush.msra.mxu0 %v311
    %693 = vmatpush.msra.mxu0 %v307
    %694 = vmatpush.msra.mxu0 %v303
    %695 = vmatpush.msra.mxu0 %v299
    %696 = vmatmul.f32.gmra.mxu0 %v672
    %v697 = vpop.f32.mrf.mxu0
    %v698 = vadd.f32 0.0, %v697
    %699 = vdwg.mxu0
    %700 = vmatpush.msra.mxu0 %v360
    %701 = vmatpush.msra.mxu0 %v356
    %702 = vmatpush.msra.mxu0 %v352
    %703 = vmatpush.msra.mxu0 %v348
    %704 = vmatpush.msra.mxu0 %v344
    %705 = vmatpush.msra.mxu0 %v340
    %706 = vmatpush.msra.mxu0 %v336
    %707 = vmatpush.msra.mxu0 %v332
    %708 = vmatpush.msra.mxu0 %v328
    %709 = vmatpush.msra.mxu0 %v324
    %710 = vmatpush.msra.mxu0 %v320
    %711 = vmatpush.msra.mxu0 %v316
    %712 = vmatpush.msra.mxu0 %v312
    %713 = vmatpush.msra.mxu0 %v308
    %714 = vmatpush.msra.mxu0 %v304
    %715 = vmatpush.msra.mxu0 %v300
    %716 = vmatmul.f32.gmra.mxu0 %v672
    %v717 = vpop.f32.mrf.mxu0
    %v718 = vadd.f32 0.0, %v717
    %719 = vdwg.mxu0
    %720 = vmatpush.msra.mxu0 %v361
    %721 = vmatpush.msra.mxu0 %v357
    %722 = vmatpush.msra.mxu0 %v353
    %723 = vmatpush.msra.mxu0 %v349
    %724 = vmatpush.msra.mxu0 %v345
    %725 = vmatpush.msra.mxu0 %v341
    %726 = vmatpush.msra.mxu0 %v337
    %727 = vmatpush.msra.mxu0 %v333
    %728 = vmatpush.msra.mxu0 %v329
    %729 = vmatpush.msra.mxu0 %v325
    %730 = vmatpush.msra.mxu0 %v321
    %731 = vmatpush.msra.mxu0 %v317
    %732 = vmatpush.msra.mxu0 %v313
    %733 = vmatpush.msra.mxu0 %v309
    %734 = vmatpush.msra.mxu0 %v305
    %735 = vmatpush.msra.mxu0 %v301
    %736 = vmatmul.f32.gmra.mxu0 %v672
    %v737 = vpop.f32.mrf.mxu0
    %v738 = vadd.f32 0.0, %v737
    %739 = vdwg.mxu0
    %740 = vmatpush.msra.mxu0 %v362
    %741 = vmatpush.msra.mxu0 %v358
    %742 = vmatpush.msra.mxu0 %v354
    %743 = vmatpush.msra.mxu0 %v350
    %744 = vmatpush.msra.mxu0 %v346
    %745 = vmatpush.msra.mxu0 %v342
    %746 = vmatpush.msra.mxu0 %v338
    %747 = vmatpush.msra.mxu0 %v334
    %748 = vmatpush.msra.mxu0 %v330
    %749 = vmatpush.msra.mxu0 %v326
    %750 = vmatpush.msra.mxu0 %v322
    %751 = vmatpush.msra.mxu0 %v318
    %752 = vmatpush.msra.mxu0 %v314
    %753 = vmatpush.msra.mxu0 %v310
    %754 = vmatpush.msra.mxu0 %v306
    %755 = vmatpush.msra.mxu0 %v302
    %756 = vmatmul.f32.gmra.mxu0 %v672
    %v757 = vpop.f32.mrf.mxu0
    %v758 = vadd.f32 0.0, %v757
    %759 = vdwg.mxu0
    %v760 = vadd.f32 %v676, %v698
    %v761 = vadd.f32 %v677, %v718
    %v762 = vadd.f32 %v678, %v738
    %v763 = vadd.f32 %v679, %v758
    %v764 = vxor.u32 %v760, 2147483648
    %v765 = vxor.u32 %v761, 2147483648
    %v766 = vxor.u32 %v762, 2147483648
    %v767 = vmul.f32 %v764, 1.442695
    %v768 = vpow.pop %v767
    %v769 = vmul.f32 %v765, 1.442695
    %v770 = vpow.pop %v769
    %v771 = vmul.f32 %v766, 1.442695
    %v772 = vpow.pop %v771
    %v773 = vadd.f32 %v768, 1.0
    %v774 = vadd.f32 %v770, 1.0
    %v775 = vadd.f32 %v772, 1.0
    %v776 = vrcp.pop %v773
    %v777 = vmul.f32 %v773, %v776
    %v778 = vsub.f32 1.0, %v777
    %v779 = vmul.f32 %v776, %v778
    %v780 = vadd.f32 %v776, %v779
    %vm781 = vweird.f32 %v773
    %vm782 = vweird.f32 %v776
    %vm783 = vmor %vm781, %vm782
    %v784 = vsel %vm783, %v776, %v780
    %v785 = vand.u32 2147483647, %v773
    %vm786 = vcmp.eq.f32.partialorder %v785, 8.507059e+37
    %v787 = vand.u32 %v773, 2147483648
    %v788 = vor.u32 1.1754944e-38, %v787
    %v789 = vsel %vm786, %v788, %v784
    %v790 = vmul.f32 1.0, %v789
    %v791 = vrcp.pop %v774
    %v792 = vmul.f32 %v774, %v791
    %v793 = vsub.f32 1.0, %v792
    %v794 = vmul.f32 %v791, %v793
    %v795 = vadd.f32 %v791, %v794
    %vm796 = vweird.f32 %v774
    %vm797 = vweird.f32 %v791
    %vm798 = vmor %vm796, %vm797
    %v799 = vsel %vm798, %v791, %v795
    %v800 = vand.u32 2147483647, %v774
    %vm801 = vcmp.eq.f32.partialorder %v800, 8.507059e+37
    %v802 = vand.u32 %v774, 2147483648
    %v803 = vor.u32 1.1754944e-38, %v802
    %v804 = vsel %vm801, %v803, %v799
    %v805 = vmul.f32 1.0, %v804
    %v806 = vrcp.pop %v775
    %v807 = vmul.f32 %v775, %v806
    %v808 = vsub.f32 1.0, %v807
    %v809 = vmul.f32 %v806, %v808
    %v810 = vadd.f32 %v806, %v809
    %vm811 = vweird.f32 %v775
    %vm812 = vweird.f32 %v806
    %vm813 = vmor %vm811, %vm812
    %v814 = vsel %vm813, %v806, %v810
    %v815 = vand.u32 2147483647, %v775
    %vm816 = vcmp.eq.f32.partialorder %v815, 8.507059e+37
    %v817 = vand.u32 %v775, 2147483648
    %v818 = vor.u32 1.1754944e-38, %v817
    %v819 = vsel %vm816, %v818, %v814
    %v820 = vmul.f32 1.0, %v819
    %v821 = vtanh.pop %v763
    %v822 = vmul.f32 %v805, %v670
    %v823 = vmul.f32 %v790, %v821
    %v824 = vadd.f32 %v822, %v823
    %v825 = vtanh.pop %v824
    %v826 = vmul.f32 %v820, %v825
    %s827 = smul.u32 3, 4
    %s828 = smul.addr %s827, 8
    %s829 = scalar_lea.vmem [#allocation2], %s828
    %v830 = vld [vmem:[%s829] sm:$0xff]
    %v831 = vld [vmem:[%s829 + $0x8] sm:$0xff]
    %v832 = vld [vmem:[%s829 + $0x10] sm:$0xff]
    %v833 = vld [vmem:[%s829 + $0x18] sm:$0xff]
    %834 = vmatpush.msra.mxu0 %v359
    %835 = vmatpush.msra.mxu0 %v355
    %836 = vmatpush.msra.mxu0 %v351
    %837 = vmatpush.msra.mxu0 %v347
    %838 = vmatpush.msra.mxu0 %v343
    %839 = vmatpush.msra.mxu0 %v339
    %840 = vmatpush.msra.mxu0 %v335
    %841 = vmatpush.msra.mxu0 %v331
    %842 = vmatpush.msra.mxu0 %v327
    %843 = vmatpush.msra.mxu0 %v323
    %844 = vmatpush.msra.mxu0 %v319
    %845 = vmatpush.msra.mxu0 %v315
    %846 = vmatpush.msra.mxu0 %v311
    %847 = vmatpush.msra.mxu0 %v307
    %848 = vmatpush.msra.mxu0 %v303
    %849 = vmatpush.msra.mxu0 %v299
    %850 = vmatmul.f32.gmra.mxu0 %v826
    %v851 = vpop.f32.mrf.mxu0
    %v852 = vadd.f32 0.0, %v851
    %853 = vdwg.mxu0
    %854 = vmatpush.msra.mxu0 %v360
    %855 = vmatpush.msra.mxu0 %v356
    %856 = vmatpush.msra.mxu0 %v352
    %857 = vmatpush.msra.mxu0 %v348
    %858 = vmatpush.msra.mxu0 %v344
    %859 = vmatpush.msra.mxu0 %v340
    %860 = vmatpush.msra.mxu0 %v336
    %861 = vmatpush.msra.mxu0 %v332
    %862 = vmatpush.msra.mxu0 %v328
    %863 = vmatpush.msra.mxu0 %v324
    %864 = vmatpush.msra.mxu0 %v320
    %865 = vmatpush.msra.mxu0 %v316
    %866 = vmatpush.msra.mxu0 %v312
    %867 = vmatpush.msra.mxu0 %v308
    %868 = vmatpush.msra.mxu0 %v304
    %869 = vmatpush.msra.mxu0 %v300
    %870 = vmatmul.f32.gmra.mxu0 %v826
    %v871 = vpop.f32.mrf.mxu0
    %v872 = vadd.f32 0.0, %v871
    %873 = vdwg.mxu0
    %874 = vmatpush.msra.mxu0 %v361
    %875 = vmatpush.msra.mxu0 %v357
    %876 = vmatpush.msra.mxu0 %v353
    %877 = vmatpush.msra.mxu0 %v349
    %878 = vmatpush.msra.mxu0 %v345
    %879 = vmatpush.msra.mxu0 %v341
    %880 = vmatpush.msra.mxu0 %v337
    %881 = vmatpush.msra.mxu0 %v333
    %882 = vmatpush.msra.mxu0 %v329
    %883 = vmatpush.msra.mxu0 %v325
    %884 = vmatpush.msra.mxu0 %v321
    %885 = vmatpush.msra.mxu0 %v317
    %886 = vmatpush.msra.mxu0 %v313
    %887 = vmatpush.msra.mxu0 %v309
    %888 = vmatpush.msra.mxu0 %v305
    %889 = vmatpush.msra.mxu0 %v301
    %890 = vmatmul.f32.gmra.mxu0 %v826
    %v891 = vpop.f32.mrf.mxu0
    %v892 = vadd.f32 0.0, %v891
    %893 = vdwg.mxu0
    %894 = vmatpush.msra.mxu0 %v362
    %895 = vmatpush.msra.mxu0 %v358
    %896 = vmatpush.msra.mxu0 %v354
    %897 = vmatpush.msra.mxu0 %v350
    %898 = vmatpush.msra.mxu0 %v346
    %899 = vmatpush.msra.mxu0 %v342
    %900 = vmatpush.msra.mxu0 %v338
    %901 = vmatpush.msra.mxu0 %v334
    %902 = vmatpush.msra.mxu0 %v330
    %903 = vmatpush.msra.mxu0 %v326
    %904 = vmatpush.msra.mxu0 %v322
    %905 = vmatpush.msra.mxu0 %v318
    %906 = vmatpush.msra.mxu0 %v314
    %907 = vmatpush.msra.mxu0 %v310
    %908 = vmatpush.msra.mxu0 %v306
    %909 = vmatpush.msra.mxu0 %v302
    %910 = vmatmul.f32.gmra.mxu0 %v826
    %v911 = vpop.f32.mrf.mxu0
    %v912 = vadd.f32 0.0, %v911
    %913 = vdwg.mxu0
    %v914 = vadd.f32 %v830, %v852
    %v915 = vadd.f32 %v831, %v872
    %v916 = vadd.f32 %v832, %v892
    %v917 = vadd.f32 %v833, %v912
    %v918 = vxor.u32 %v914, 2147483648
    %v919 = vxor.u32 %v915, 2147483648
    %v920 = vxor.u32 %v916, 2147483648
    %v921 = vmul.f32 %v918, 1.442695
    %v922 = vpow.pop %v921
    %v923 = vmul.f32 %v919, 1.442695
    %v924 = vpow.pop %v923
    %v925 = vmul.f32 %v920, 1.442695
    %v926 = vpow.pop %v925
    %v927 = vadd.f32 %v922, 1.0
    %v928 = vadd.f32 %v924, 1.0
    %v929 = vadd.f32 %v926, 1.0
    %v930 = vrcp.pop %v927
    %v931 = vmul.f32 %v927, %v930
    %v932 = vsub.f32 1.0, %v931
    %v933 = vmul.f32 %v930, %v932
    %v934 = vadd.f32 %v930, %v933
    %vm935 = vweird.f32 %v927
    %vm936 = vweird.f32 %v930
    %vm937 = vmor %vm935, %vm936
    %v938 = vsel %vm937, %v930, %v934
    %v939 = vand.u32 2147483647, %v927
    %vm940 = vcmp.eq.f32.partialorder %v939, 8.507059e+37
    %v941 = vand.u32 %v927, 2147483648
    %v942 = vor.u32 1.1754944e-38, %v941
    %v943 = vsel %vm940, %v942, %v938
    %v944 = vmul.f32 1.0, %v943
    %v945 = vrcp.pop %v928
    %v946 = vmul.f32 %v928, %v945
    %v947 = vsub.f32 1.0, %v946
    %v948 = vmul.f32 %v945, %v947
    %v949 = vadd.f32 %v945, %v948
    %vm950 = vweird.f32 %v928
    %vm951 = vweird.f32 %v945
    %vm952 = vmor %vm950, %vm951
    %v953 = vsel %vm952, %v945, %v949
    %v954 = vand.u32 2147483647, %v928
    %vm955 = vcmp.eq.f32.partialorder %v954, 8.507059e+37
    %v956 = vand.u32 %v928, 2147483648
    %v957 = vor.u32 1.1754944e-38, %v956
    %v958 = vsel %vm955, %v957, %v953
    %v959 = vmul.f32 1.0, %v958
    %v960 = vrcp.pop %v929
    %v961 = vmul.f32 %v929, %v960
    %v962 = vsub.f32 1.0, %v961
    %v963 = vmul.f32 %v960, %v962
    %v964 = vadd.f32 %v960, %v963
    %vm965 = vweird.f32 %v929
    %vm966 = vweird.f32 %v960
    %vm967 = vmor %vm965, %vm966
    %v968 = vsel %vm967, %v960, %v964
    %v969 = vand.u32 2147483647, %v929
    %vm970 = vcmp.eq.f32.partialorder %v969, 8.507059e+37
    %v971 = vand.u32 %v929, 2147483648
    %v972 = vor.u32 1.1754944e-38, %v971
    %v973 = vsel %vm970, %v972, %v968
    %v974 = vmul.f32 1.0, %v973
    %v975 = vtanh.pop %v917
    %v976 = vmul.f32 %v959, %v824
    %v977 = vmul.f32 %v944, %v975
    %v978 = vadd.f32 %v976, %v977
    %v979 = vtanh.pop %v978
    %v980 = vmul.f32 %v974, %v979
    %s981 = smul.u32 4, 4
    %s982 = smul.addr %s981, 8
    %s983 = scalar_lea.vmem [#allocation2], %s982
    %v984 = vld [vmem:[%s983] sm:$0xff]
    %v985 = vld [vmem:[%s983 + $0x8] sm:$0xff]
    %v986 = vld [vmem:[%s983 + $0x10] sm:$0xff]
    %v987 = vld [vmem:[%s983 + $0x18] sm:$0xff]
    %988 = vmatpush.msra.mxu0 %v359
    %989 = vmatpush.msra.mxu0 %v355
    %990 = vmatpush.msra.mxu0 %v351
    %991 = vmatpush.msra.mxu0 %v347
    %992 = vmatpush.msra.mxu0 %v343
    %993 = vmatpush.msra.mxu0 %v339
    %994 = vmatpush.msra.mxu0 %v335
    %995 = vmatpush.msra.mxu0 %v331
    %996 = vmatpush.msra.mxu0 %v327
    %997 = vmatpush.msra.mxu0 %v323
    %998 = vmatpush.msra.mxu0 %v319
    %999 = vmatpush.msra.mxu0 %v315
    %1000 = vmatpush.msra.mxu0 %v311
    %1001 = vmatpush.msra.mxu0 %v307
    %1002 = vmatpush.msra.mxu0 %v303
    %1003 = vmatpush.msra.mxu0 %v299
    %1004 = vmatmul.f32.gmra.mxu0 %v980
    %v1005 = vpop.f32.mrf.mxu0
    %v1006 = vadd.f32 0.0, %v1005
    %1007 = vdwg.mxu0
    %1008 = vmatpush.msra.mxu0 %v360
    %1009 = vmatpush.msra.mxu0 %v356
    %1010 = vmatpush.msra.mxu0 %v352
    %1011 = vmatpush.msra.mxu0 %v348
    %1012 = vmatpush.msra.mxu0 %v344
    %1013 = vmatpush.msra.mxu0 %v340
    %1014 = vmatpush.msra.mxu0 %v336
    %1015 = vmatpush.msra.mxu0 %v332
    %1016 = vmatpush.msra.mxu0 %v328
    %1017 = vmatpush.msra.mxu0 %v324
    %1018 = vmatpush.msra.mxu0 %v320
    %1019 = vmatpush.msra.mxu0 %v316
    %1020 = vmatpush.msra.mxu0 %v312
    %1021 = vmatpush.msra.mxu0 %v308
    %1022 = vmatpush.msra.mxu0 %v304
    %1023 = vmatpush.msra.mxu0 %v300
    %1024 = vmatmul.f32.gmra.mxu0 %v980
    %v1025 = vpop.f32.mrf.mxu0
    %v1026 = vadd.f32 0.0, %v1025
    %1027 = vdwg.mxu0
    %1028 = vmatpush.msra.mxu0 %v361
    %1029 = vmatpush.msra.mxu0 %v357
    %1030 = vmatpush.msra.mxu0 %v353
    %1031 = vmatpush.msra.mxu0 %v349
    %1032 = vmatpush.msra.mxu0 %v345
    %1033 = vmatpush.msra.mxu0 %v341
    %1034 = vmatpush.msra.mxu0 %v337
    %1035 = vmatpush.msra.mxu0 %v333
    %1036 = vmatpush.msra.mxu0 %v329
    %1037 = vmatpush.msra.mxu0 %v325
    %1038 = vmatpush.msra.mxu0 %v321
    %1039 = vmatpush.msra.mxu0 %v317
    %1040 = vmatpush.msra.mxu0 %v313
    %1041 = vmatpush.msra.mxu0 %v309
    %1042 = vmatpush.msra.mxu0 %v305
    %1043 = vmatpush.msra.mxu0 %v301
    %1044 = vmatmul.f32.gmra.mxu0 %v980
    %v1045 = vpop.f32.mrf.mxu0
    %v1046 = vadd.f32 0.0, %v1045
    %1047 = vdwg.mxu0
    %1048 = vmatpush.msra.mxu0 %v362
    %1049 = vmatpush.msra.mxu0 %v358
    %1050 = vmatpush.msra.mxu0 %v354
    %1051 = vmatpush.msra.mxu0 %v350
    %1052 = vmatpush.msra.mxu0 %v346
    %1053 = vmatpush.msra.mxu0 %v342
    %1054 = vmatpush.msra.mxu0 %v338
    %1055 = vmatpush.msra.mxu0 %v334
    %1056 = vmatpush.msra.mxu0 %v330
    %1057 = vmatpush.msra.mxu0 %v326
    %1058 = vmatpush.msra.mxu0 %v322
    %1059 = vmatpush.msra.mxu0 %v318
    %1060 = vmatpush.msra.mxu0 %v314
    %1061 = vmatpush.msra.mxu0 %v310
    %1062 = vmatpush.msra.mxu0 %v306
    %1063 = vmatpush.msra.mxu0 %v302
    %1064 = vmatmul.f32.gmra.mxu0 %v980
    %v1065 = vpop.f32.mrf.mxu0
    %v1066 = vadd.f32 0.0, %v1065
    %1067 = vdwg.mxu0
    %v1068 = vadd.f32 %v984, %v1006
    %v1069 = vadd.f32 %v985, %v1026
    %v1070 = vadd.f32 %v986, %v1046
    %v1071 = vadd.f32 %v987, %v1066
    %v1072 = vxor.u32 %v1068, 2147483648
    %v1073 = vxor.u32 %v1069, 2147483648
    %v1074 = vxor.u32 %v1070, 2147483648
    %v1075 = vmul.f32 %v1072, 1.442695
    %v1076 = vpow.pop %v1075
    %v1077 = vmul.f32 %v1073, 1.442695
    %v1078 = vpow.pop %v1077
    %v1079 = vmul.f32 %v1074, 1.442695
    %v1080 = vpow.pop %v1079
    %v1081 = vadd.f32 %v1076, 1.0
    %v1082 = vadd.f32 %v1078, 1.0
    %v1083 = vadd.f32 %v1080, 1.0
    %v1084 = vrcp.pop %v1081
    %v1085 = vmul.f32 %v1081, %v1084
    %v1086 = vsub.f32 1.0, %v1085
    %v1087 = vmul.f32 %v1084, %v1086
    %v1088 = vadd.f32 %v1084, %v1087
    %vm1089 = vweird.f32 %v1081
    %vm1090 = vweird.f32 %v1084
    %vm1091 = vmor %vm1089, %vm1090
    %v1092 = vsel %vm1091, %v1084, %v1088
    %v1093 = vand.u32 2147483647, %v1081
    %vm1094 = vcmp.eq.f32.partialorder %v1093, 8.507059e+37
    %v1095 = vand.u32 %v1081, 2147483648
    %v1096 = vor.u32 1.1754944e-38, %v1095
    %v1097 = vsel %vm1094, %v1096, %v1092
    %v1098 = vmul.f32 1.0, %v1097
    %v1099 = vrcp.pop %v1082
    %v1100 = vmul.f32 %v1082, %v1099
    %v1101 = vsub.f32 1.0, %v1100
    %v1102 = vmul.f32 %v1099, %v1101
    %v1103 = vadd.f32 %v1099, %v1102
    %vm1104 = vweird.f32 %v1082
    %vm1105 = vweird.f32 %v1099
    %vm1106 = vmor %vm1104, %vm1105
    %v1107 = vsel %vm1106, %v1099, %v1103
    %v1108 = vand.u32 2147483647, %v1082
    %vm1109 = vcmp.eq.f32.partialorder %v1108, 8.507059e+37
    %v1110 = vand.u32 %v1082, 2147483648
    %v1111 = vor.u32 1.1754944e-38, %v1110
    %v1112 = vsel %vm1109, %v1111, %v1107
    %v1113 = vmul.f32 1.0, %v1112
    %v1114 = vrcp.pop %v1083
    %v1115 = vmul.f32 %v1083, %v1114
    %v1116 = vsub.f32 1.0, %v1115
    %v1117 = vmul.f32 %v1114, %v1116
    %v1118 = vadd.f32 %v1114, %v1117
    %vm1119 = vweird.f32 %v1083
    %vm1120 = vweird.f32 %v1114
    %vm1121 = vmor %vm1119, %vm1120
    %v1122 = vsel %vm1121, %v1114, %v1118
    %v1123 = vand.u32 2147483647, %v1083
    %vm1124 = vcmp.eq.f32.partialorder %v1123, 8.507059e+37
    %v1125 = vand.u32 %v1083, 2147483648
    %v1126 = vor.u32 1.1754944e-38, %v1125
    %v1127 = vsel %vm1124, %v1126, %v1122
    %v1128 = vmul.f32 1.0, %v1127
    %v1129 = vtanh.pop %v1071
    %v1130 = vmul.f32 %v1113, %v978
    %v1131 = vmul.f32 %v1098, %v1129
    %v1132 = vadd.f32 %v1130, %v1131
    %v1133 = vtanh.pop %v1132
    %v1134 = vmul.f32 %v1128, %v1133
    %s1135 = smul.u32 5, 4
    %s1136 = smul.addr %s1135, 8
    %s1137 = scalar_lea.vmem [#allocation2], %s1136
    %v1138 = vld [vmem:[%s1137] sm:$0xff]
    %v1139 = vld [vmem:[%s1137 + $0x8] sm:$0xff]
    %v1140 = vld [vmem:[%s1137 + $0x10] sm:$0xff]
    %v1141 = vld [vmem:[%s1137 + $0x18] sm:$0xff]
    %1142 = vmatpush.msra.mxu0 %v359
    %1143 = vmatpush.msra.mxu0 %v355
    %1144 = vmatpush.msra.mxu0 %v351
    %1145 = vmatpush.msra.mxu0 %v347
    %1146 = vmatpush.msra.mxu0 %v343
    %1147 = vmatpush.msra.mxu0 %v339
    %1148 = vmatpush.msra.mxu0 %v335
    %1149 = vmatpush.msra.mxu0 %v331
    %1150 = vmatpush.msra.mxu0 %v327
    %1151 = vmatpush.msra.mxu0 %v323
    %1152 = vmatpush.msra.mxu0 %v319
    %1153 = vmatpush.msra.mxu0 %v315
    %1154 = vmatpush.msra.mxu0 %v311
    %1155 = vmatpush.msra.mxu0 %v307
    %1156 = vmatpush.msra.mxu0 %v303
    %1157 = vmatpush.msra.mxu0 %v299
    %1158 = vmatmul.f32.gmra.mxu0 %v1134
    %v1159 = vpop.f32.mrf.mxu0
    %v1160 = vadd.f32 0.0, %v1159
    %1161 = vdwg.mxu0
    %1162 = vmatpush.msra.mxu0 %v360
    %1163 = vmatpush.msra.mxu0 %v356
    %1164 = vmatpush.msra.mxu0 %v352
    %1165 = vmatpush.msra.mxu0 %v348
    %1166 = vmatpush.msra.mxu0 %v344
    %1167 = vmatpush.msra.mxu0 %v340
    %1168 = vmatpush.msra.mxu0 %v336
    %1169 = vmatpush.msra.mxu0 %v332
    %1170 = vmatpush.msra.mxu0 %v328
    %1171 = vmatpush.msra.mxu0 %v324
    %1172 = vmatpush.msra.mxu0 %v320
    %1173 = vmatpush.msra.mxu0 %v316
    %1174 = vmatpush.msra.mxu0 %v312
    %1175 = vmatpush.msra.mxu0 %v308
    %1176 = vmatpush.msra.mxu0 %v304
    %1177 = vmatpush.msra.mxu0 %v300
    %1178 = vmatmul.f32.gmra.mxu0 %v1134
    %v1179 = vpop.f32.mrf.mxu0
    %v1180 = vadd.f32 0.0, %v1179
    %1181 = vdwg.mxu0
    %1182 = vmatpush.msra.mxu0 %v361
    %1183 = vmatpush.msra.mxu0 %v357
    %1184 = vmatpush.msra.mxu0 %v353
    %1185 = vmatpush.msra.mxu0 %v349
    %1186 = vmatpush.msra.mxu0 %v345
    %1187 = vmatpush.msra.mxu0 %v341
    %1188 = vmatpush.msra.mxu0 %v337
    %1189 = vmatpush.msra.mxu0 %v333
    %1190 = vmatpush.msra.mxu0 %v329
    %1191 = vmatpush.msra.mxu0 %v325
    %1192 = vmatpush.msra.mxu0 %v321
    %1193 = vmatpush.msra.mxu0 %v317
    %1194 = vmatpush.msra.mxu0 %v313
    %1195 = vmatpush.msra.mxu0 %v309
    %1196 = vmatpush.msra.mxu0 %v305
    %1197 = vmatpush.msra.mxu0 %v301
    %1198 = vmatmul.f32.gmra.mxu0 %v1134
    %v1199 = vpop.f32.mrf.mxu0
    %v1200 = vadd.f32 0.0, %v1199
    %1201 = vdwg.mxu0
    %1202 = vmatpush.msra.mxu0 %v362
    %1203 = vmatpush.msra.mxu0 %v358
    %1204 = vmatpush.msra.mxu0 %v354
    %1205 = vmatpush.msra.mxu0 %v350
    %1206 = vmatpush.msra.mxu0 %v346
    %1207 = vmatpush.msra.mxu0 %v342
    %1208 = vmatpush.msra.mxu0 %v338
    %1209 = vmatpush.msra.mxu0 %v334
    %1210 = vmatpush.msra.mxu0 %v330
    %1211 = vmatpush.msra.mxu0 %v326
    %1212 = vmatpush.msra.mxu0 %v322
    %1213 = vmatpush.msra.mxu0 %v318
    %1214 = vmatpush.msra.mxu0 %v314
    %1215 = vmatpush.msra.mxu0 %v310
    %1216 = vmatpush.msra.mxu0 %v306
    %1217 = vmatpush.msra.mxu0 %v302
    %1218 = vmatmul.f32.gmra.mxu0 %v1134
    %v1219 = vpop.f32.mrf.mxu0
    %v1220 = vadd.f32 0.0, %v1219
    %1221 = vdwg.mxu0
    %v1222 = vadd.f32 %v1138, %v1160
    %v1223 = vadd.f32 %v1139, %v1180
    %v1224 = vadd.f32 %v1140, %v1200
    %v1225 = vadd.f32 %v1141, %v1220
    %v1226 = vxor.u32 %v1222, 2147483648
    %v1227 = vxor.u32 %v1223, 2147483648
    %v1228 = vxor.u32 %v1224, 2147483648
    %v1229 = vmul.f32 %v1226, 1.442695
    %v1230 = vpow.pop %v1229
    %v1231 = vmul.f32 %v1227, 1.442695
    %v1232 = vpow.pop %v1231
    %v1233 = vmul.f32 %v1228, 1.442695
    %v1234 = vpow.pop %v1233
    %v1235 = vadd.f32 %v1230, 1.0
    %v1236 = vadd.f32 %v1232, 1.0
    %v1237 = vadd.f32 %v1234, 1.0
    %v1238 = vrcp.pop %v1235
    %v1239 = vmul.f32 %v1235, %v1238
    %v1240 = vsub.f32 1.0, %v1239
    %v1241 = vmul.f32 %v1238, %v1240
    %v1242 = vadd.f32 %v1238, %v1241
    %vm1243 = vweird.f32 %v1235
    %vm1244 = vweird.f32 %v1238
    %vm1245 = vmor %vm1243, %vm1244
    %v1246 = vsel %vm1245, %v1238, %v1242
    %v1247 = vand.u32 2147483647, %v1235
    %vm1248 = vcmp.eq.f32.partialorder %v1247, 8.507059e+37
    %v1249 = vand.u32 %v1235, 2147483648
    %v1250 = vor.u32 1.1754944e-38, %v1249
    %v1251 = vsel %vm1248, %v1250, %v1246
    %v1252 = vmul.f32 1.0, %v1251
    %v1253 = vrcp.pop %v1236
    %v1254 = vmul.f32 %v1236, %v1253
    %v1255 = vsub.f32 1.0, %v1254
    %v1256 = vmul.f32 %v1253, %v1255
    %v1257 = vadd.f32 %v1253, %v1256
    %vm1258 = vweird.f32 %v1236
    %vm1259 = vweird.f32 %v1253
    %vm1260 = vmor %vm1258, %vm1259
    %v1261 = vsel %vm1260, %v1253, %v1257
    %v1262 = vand.u32 2147483647, %v1236
    %vm1263 = vcmp.eq.f32.partialorder %v1262, 8.507059e+37
    %v1264 = vand.u32 %v1236, 2147483648
    %v1265 = vor.u32 1.1754944e-38, %v1264
    %v1266 = vsel %vm1263, %v1265, %v1261
    %v1267 = vmul.f32 1.0, %v1266
    %v1268 = vrcp.pop %v1237
    %v1269 = vmul.f32 %v1237, %v1268
    %v1270 = vsub.f32 1.0, %v1269
    %v1271 = vmul.f32 %v1268, %v1270
    %v1272 = vadd.f32 %v1268, %v1271
    %vm1273 = vweird.f32 %v1237
    %vm1274 = vweird.f32 %v1268
    %vm1275 = vmor %vm1273, %vm1274
    %v1276 = vsel %vm1275, %v1268, %v1272
    %v1277 = vand.u32 2147483647, %v1237
    %vm1278 = vcmp.eq.f32.partialorder %v1277, 8.507059e+37
    %v1279 = vand.u32 %v1237, 2147483648
    %v1280 = vor.u32 1.1754944e-38, %v1279
    %v1281 = vsel %vm1278, %v1280, %v1276
    %v1282 = vmul.f32 1.0, %v1281
    %v1283 = vtanh.pop %v1225
    %v1284 = vmul.f32 %v1267, %v1132
    %v1285 = vmul.f32 %v1252, %v1283
    %v1286 = vadd.f32 %v1284, %v1285
    %v1287 = vtanh.pop %v1286
    %v1288 = vmul.f32 %v1282, %v1287
    %s1289 = smul.u32 6, 4
    %s1290 = smul.addr %s1289, 8
    %s1291 = scalar_lea.vmem [#allocation2], %s1290
    %v1292 = vld [vmem:[%s1291] sm:$0xff]
    %v1293 = vld [vmem:[%s1291 + $0x8] sm:$0xff]
    %v1294 = vld [vmem:[%s1291 + $0x10] sm:$0xff]
    %v1295 = vld [vmem:[%s1291 + $0x18] sm:$0xff]
    %1296 = vmatpush.msra.mxu0 %v359
    %1297 = vmatpush.msra.mxu0 %v355
    %1298 = vmatpush.msra.mxu0 %v351
    %1299 = vmatpush.msra.mxu0 %v347
    %1300 = vmatpush.msra.mxu0 %v343
    %1301 = vmatpush.msra.mxu0 %v339
    %1302 = vmatpush.msra.mxu0 %v335
    %1303 = vmatpush.msra.mxu0 %v331
    %1304 = vmatpush.msra.mxu0 %v327
    %1305 = vmatpush.msra.mxu0 %v323
    %1306 = vmatpush.msra.mxu0 %v319
    %1307 = vmatpush.msra.mxu0 %v315
    %1308 = vmatpush.msra.mxu0 %v311
    %1309 = vmatpush.msra.mxu0 %v307
    %1310 = vmatpush.msra.mxu0 %v303
    %1311 = vmatpush.msra.mxu0 %v299
    %1312 = vmatmul.f32.gmra.mxu0 %v1288
    %v1313 = vpop.f32.mrf.mxu0
    %v1314 = vadd.f32 0.0, %v1313
    %1315 = vdwg.mxu0
    %1316 = vmatpush.msra.mxu0 %v360
    %1317 = vmatpush.msra.mxu0 %v356
    %1318 = vmatpush.msra.mxu0 %v352
    %1319 = vmatpush.msra.mxu0 %v348
    %1320 = vmatpush.msra.mxu0 %v344
    %1321 = vmatpush.msra.mxu0 %v340
    %1322 = vmatpush.msra.mxu0 %v336
    %1323 = vmatpush.msra.mxu0 %v332
    %1324 = vmatpush.msra.mxu0 %v328
    %1325 = vmatpush.msra.mxu0 %v324
    %1326 = vmatpush.msra.mxu0 %v320
    %1327 = vmatpush.msra.mxu0 %v316
    %1328 = vmatpush.msra.mxu0 %v312
    %1329 = vmatpush.msra.mxu0 %v308
    %1330 = vmatpush.msra.mxu0 %v304
    %1331 = vmatpush.msra.mxu0 %v300
    %1332 = vmatmul.f32.gmra.mxu0 %v1288
    %v1333 = vpop.f32.mrf.mxu0
    %v1334 = vadd.f32 0.0, %v1333
    %1335 = vdwg.mxu0
    %1336 = vmatpush.msra.mxu0 %v361
    %1337 = vmatpush.msra.mxu0 %v357
    %1338 = vmatpush.msra.mxu0 %v353
    %1339 = vmatpush.msra.mxu0 %v349
    %1340 = vmatpush.msra.mxu0 %v345
    %1341 = vmatpush.msra.mxu0 %v341
    %1342 = vmatpush.msra.mxu0 %v337
    %1343 = vmatpush.msra.mxu0 %v333
    %1344 = vmatpush.msra.mxu0 %v329
    %1345 = vmatpush.msra.mxu0 %v325
    %1346 = vmatpush.msra.mxu0 %v321
    %1347 = vmatpush.msra.mxu0 %v317
    %1348 = vmatpush.msra.mxu0 %v313
    %1349 = vmatpush.msra.mxu0 %v309
    %1350 = vmatpush.msra.mxu0 %v305
    %1351 = vmatpush.msra.mxu0 %v301
    %1352 = vmatmul.f32.gmra.mxu0 %v1288
    %v1353 = vpop.f32.mrf.mxu0
    %v1354 = vadd.f32 0.0, %v1353
    %1355 = vdwg.mxu0
    %1356 = vmatpush.msra.mxu0 %v362
    %1357 = vmatpush.msra.mxu0 %v358
    %1358 = vmatpush.msra.mxu0 %v354
    %1359 = vmatpush.msra.mxu0 %v350
    %1360 = vmatpush.msra.mxu0 %v346
    %1361 = vmatpush.msra.mxu0 %v342
    %1362 = vmatpush.msra.mxu0 %v338
    %1363 = vmatpush.msra.mxu0 %v334
    %1364 = vmatpush.msra.mxu0 %v330
    %1365 = vmatpush.msra.mxu0 %v326
    %1366 = vmatpush.msra.mxu0 %v322
    %1367 = vmatpush.msra.mxu0 %v318
    %1368 = vmatpush.msra.mxu0 %v314
    %1369 = vmatpush.msra.mxu0 %v310
    %1370 = vmatpush.msra.mxu0 %v306
    %1371 = vmatpush.msra.mxu0 %v302
    %1372 = vmatmul.f32.gmra.mxu0 %v1288
    %v1373 = vpop.f32.mrf.mxu0
    %v1374 = vadd.f32 0.0, %v1373
    %1375 = vdwg.mxu0
    %v1376 = vadd.f32 %v1292, %v1314
    %v1377 = vadd.f32 %v1293, %v1334
    %v1378 = vadd.f32 %v1294, %v1354
    %v1379 = vadd.f32 %v1295, %v1374
    %v1380 = vxor.u32 %v1376, 2147483648
    %v1381 = vxor.u32 %v1377, 2147483648
    %v1382 = vxor.u32 %v1378, 2147483648
    %v1383 = vmul.f32 %v1380, 1.442695
    %v1384 = vpow.pop %v1383
    %v1385 = vmul.f32 %v1381, 1.442695
    %v1386 = vpow.pop %v1385
    %v1387 = vmul.f32 %v1382, 1.442695
    %v1388 = vpow.pop %v1387
    %v1389 = vadd.f32 %v1384, 1.0
    %v1390 = vadd.f32 %v1386, 1.0
    %v1391 = vadd.f32 %v1388, 1.0
    %v1392 = vrcp.pop %v1389
    %v1393 = vmul.f32 %v1389, %v1392
    %v1394 = vsub.f32 1.0, %v1393
    %v1395 = vmul.f32 %v1392, %v1394
    %v1396 = vadd.f32 %v1392, %v1395
    %vm1397 = vweird.f32 %v1389
    %vm1398 = vweird.f32 %v1392
    %vm1399 = vmor %vm1397, %vm1398
    %v1400 = vsel %vm1399, %v1392, %v1396
    %v1401 = vand.u32 2147483647, %v1389
    %vm1402 = vcmp.eq.f32.partialorder %v1401, 8.507059e+37
    %v1403 = vand.u32 %v1389, 2147483648
    %v1404 = vor.u32 1.1754944e-38, %v1403
    %v1405 = vsel %vm1402, %v1404, %v1400
    %v1406 = vmul.f32 1.0, %v1405
    %v1407 = vrcp.pop %v1390
    %v1408 = vmul.f32 %v1390, %v1407
    %v1409 = vsub.f32 1.0, %v1408
    %v1410 = vmul.f32 %v1407, %v1409
    %v1411 = vadd.f32 %v1407, %v1410
    %vm1412 = vweird.f32 %v1390
    %vm1413 = vweird.f32 %v1407
    %vm1414 = vmor %vm1412, %vm1413
    %v1415 = vsel %vm1414, %v1407, %v1411
    %v1416 = vand.u32 2147483647, %v1390
    %vm1417 = vcmp.eq.f32.partialorder %v1416, 8.507059e+37
    %v1418 = vand.u32 %v1390, 2147483648
    %v1419 = vor.u32 1.1754944e-38, %v1418
    %v1420 = vsel %vm1417, %v1419, %v1415
    %v1421 = vmul.f32 1.0, %v1420
    %v1422 = vrcp.pop %v1391
    %v1423 = vmul.f32 %v1391, %v1422
    %v1424 = vsub.f32 1.0, %v1423
    %v1425 = vmul.f32 %v1422, %v1424
    %v1426 = vadd.f32 %v1422, %v1425
    %vm1427 = vweird.f32 %v1391
    %vm1428 = vweird.f32 %v1422
    %vm1429 = vmor %vm1427, %vm1428
    %v1430 = vsel %vm1429, %v1422, %v1426
    %v1431 = vand.u32 2147483647, %v1391
    %vm1432 = vcmp.eq.f32.partialorder %v1431, 8.507059e+37
    %v1433 = vand.u32 %v1391, 2147483648
    %v1434 = vor.u32 1.1754944e-38, %v1433
    %v1435 = vsel %vm1432, %v1434, %v1430
    %v1436 = vmul.f32 1.0, %v1435
    %v1437 = vtanh.pop %v1379
    %v1438 = vmul.f32 %v1421, %v1286
    %v1439 = vmul.f32 %v1406, %v1437
    %v1440 = vadd.f32 %v1438, %v1439
    %v1441 = vtanh.pop %v1440
    %v1442 = vmul.f32 %v1436, %v1441
    %s1443 = smul.u32 7, 4
    %s1444 = smul.addr %s1443, 8
    %s1445 = scalar_lea.vmem [#allocation2], %s1444
    %v1446 = vld [vmem:[%s1445] sm:$0xff]
    %v1447 = vld [vmem:[%s1445 + $0x8] sm:$0xff]
    %v1448 = vld [vmem:[%s1445 + $0x10] sm:$0xff]
    %v1449 = vld [vmem:[%s1445 + $0x18] sm:$0xff]
    %1450 = vmatpush.msra.mxu0 %v359
    %1451 = vmatpush.msra.mxu0 %v355
    %1452 = vmatpush.msra.mxu0 %v351
    %1453 = vmatpush.msra.mxu0 %v347
    %1454 = vmatpush.msra.mxu0 %v343
    %1455 = vmatpush.msra.mxu0 %v339
    %1456 = vmatpush.msra.mxu0 %v335
    %1457 = vmatpush.msra.mxu0 %v331
    %1458 = vmatpush.msra.mxu0 %v327
    %1459 = vmatpush.msra.mxu0 %v323
    %1460 = vmatpush.msra.mxu0 %v319
    %1461 = vmatpush.msra.mxu0 %v315
    %1462 = vmatpush.msra.mxu0 %v311
    %1463 = vmatpush.msra.mxu0 %v307
    %1464 = vmatpush.msra.mxu0 %v303
    %1465 = vmatpush.msra.mxu0 %v299
    %1466 = vmatmul.f32.gmra.mxu0 %v1442
    %v1467 = vpop.f32.mrf.mxu0
    %v1468 = vadd.f32 0.0, %v1467
    %1469 = vdwg.mxu0
    %1470 = vmatpush.msra.mxu0 %v360
    %1471 = vmatpush.msra.mxu0 %v356
    %1472 = vmatpush.msra.mxu0 %v352
    %1473 = vmatpush.msra.mxu0 %v348
    %1474 = vmatpush.msra.mxu0 %v344
    %1475 = vmatpush.msra.mxu0 %v340
    %1476 = vmatpush.msra.mxu0 %v336
    %1477 = vmatpush.msra.mxu0 %v332
    %1478 = vmatpush.msra.mxu0 %v328
    %1479 = vmatpush.msra.mxu0 %v324
    %1480 = vmatpush.msra.mxu0 %v320
    %1481 = vmatpush.msra.mxu0 %v316
    %1482 = vmatpush.msra.mxu0 %v312
    %1483 = vmatpush.msra.mxu0 %v308
    %1484 = vmatpush.msra.mxu0 %v304
    %1485 = vmatpush.msra.mxu0 %v300
    %1486 = vmatmul.f32.gmra.mxu0 %v1442
    %v1487 = vpop.f32.mrf.mxu0
    %v1488 = vadd.f32 0.0, %v1487
    %1489 = vdwg.mxu0
    %1490 = vmatpush.msra.mxu0 %v361
    %1491 = vmatpush.msra.mxu0 %v357
    %1492 = vmatpush.msra.mxu0 %v353
    %1493 = vmatpush.msra.mxu0 %v349
    %1494 = vmatpush.msra.mxu0 %v345
    %1495 = vmatpush.msra.mxu0 %v341
    %1496 = vmatpush.msra.mxu0 %v337
    %1497 = vmatpush.msra.mxu0 %v333
    %1498 = vmatpush.msra.mxu0 %v329
    %1499 = vmatpush.msra.mxu0 %v325
    %1500 = vmatpush.msra.mxu0 %v321
    %1501 = vmatpush.msra.mxu0 %v317
    %1502 = vmatpush.msra.mxu0 %v313
    %1503 = vmatpush.msra.mxu0 %v309
    %1504 = vmatpush.msra.mxu0 %v305
    %1505 = vmatpush.msra.mxu0 %v301
    %1506 = vmatmul.f32.gmra.mxu0 %v1442
    %v1507 = vpop.f32.mrf.mxu0
    %v1508 = vadd.f32 0.0, %v1507
    %1509 = vdwg.mxu0
    %1510 = vmatpush.msra.mxu0 %v362
    %1511 = vmatpush.msra.mxu0 %v358
    %1512 = vmatpush.msra.mxu0 %v354
    %1513 = vmatpush.msra.mxu0 %v350
    %1514 = vmatpush.msra.mxu0 %v346
    %1515 = vmatpush.msra.mxu0 %v342
    %1516 = vmatpush.msra.mxu0 %v338
    %1517 = vmatpush.msra.mxu0 %v334
    %1518 = vmatpush.msra.mxu0 %v330
    %1519 = vmatpush.msra.mxu0 %v326
    %1520 = vmatpush.msra.mxu0 %v322
    %1521 = vmatpush.msra.mxu0 %v318
    %1522 = vmatpush.msra.mxu0 %v314
    %1523 = vmatpush.msra.mxu0 %v310
    %1524 = vmatpush.msra.mxu0 %v306
    %1525 = vmatpush.msra.mxu0 %v302
    %1526 = vmatmul.f32.gmra.mxu0 %v1442
    %v1527 = vpop.f32.mrf.mxu0
    %v1528 = vadd.f32 0.0, %v1527
    %1529 = vdwg.mxu0
    %v1530 = vadd.f32 %v1446, %v1468
    %v1531 = vadd.f32 %v1447, %v1488
    %v1532 = vadd.f32 %v1448, %v1508
    %v1533 = vadd.f32 %v1449, %v1528
    %v1534 = vxor.u32 %v1530, 2147483648
    %v1535 = vxor.u32 %v1531, 2147483648
    %v1536 = vxor.u32 %v1532, 2147483648
    %v1537 = vmul.f32 %v1534, 1.442695
    %v1538 = vpow.pop %v1537
    %v1539 = vmul.f32 %v1535, 1.442695
    %v1540 = vpow.pop %v1539
    %v1541 = vmul.f32 %v1536, 1.442695
    %v1542 = vpow.pop %v1541
    %v1543 = vadd.f32 %v1538, 1.0
    %v1544 = vadd.f32 %v1540, 1.0
    %v1545 = vadd.f32 %v1542, 1.0
    %v1546 = vrcp.pop %v1543
    %v1547 = vmul.f32 %v1543, %v1546
    %v1548 = vsub.f32 1.0, %v1547
    %v1549 = vmul.f32 %v1546, %v1548
    %v1550 = vadd.f32 %v1546, %v1549
    %vm1551 = vweird.f32 %v1543
    %vm1552 = vweird.f32 %v1546
    %vm1553 = vmor %vm1551, %vm1552
    %v1554 = vsel %vm1553, %v1546, %v1550
    %v1555 = vand.u32 2147483647, %v1543
    %vm1556 = vcmp.eq.f32.partialorder %v1555, 8.507059e+37
    %v1557 = vand.u32 %v1543, 2147483648
    %v1558 = vor.u32 1.1754944e-38, %v1557
    %v1559 = vsel %vm1556, %v1558, %v1554
    %v1560 = vmul.f32 1.0, %v1559
    %v1561 = vrcp.pop %v1544
    %v1562 = vmul.f32 %v1544, %v1561
    %v1563 = vsub.f32 1.0, %v1562
    %v1564 = vmul.f32 %v1561, %v1563
    %v1565 = vadd.f32 %v1561, %v1564
    %vm1566 = vweird.f32 %v1544
    %vm1567 = vweird.f32 %v1561
    %vm1568 = vmor %vm1566, %vm1567
    %v1569 = vsel %vm1568, %v1561, %v1565
    %v1570 = vand.u32 2147483647, %v1544
    %vm1571 = vcmp.eq.f32.partialorder %v1570, 8.507059e+37
    %v1572 = vand.u32 %v1544, 2147483648
    %v1573 = vor.u32 1.1754944e-38, %v1572
    %v1574 = vsel %vm1571, %v1573, %v1569
    %v1575 = vmul.f32 1.0, %v1574
    %v1576 = vrcp.pop %v1545
    %v1577 = vmul.f32 %v1545, %v1576
    %v1578 = vsub.f32 1.0, %v1577
    %v1579 = vmul.f32 %v1576, %v1578
    %v1580 = vadd.f32 %v1576, %v1579
    %vm1581 = vweird.f32 %v1545
    %vm1582 = vweird.f32 %v1576
    %vm1583 = vmor %vm1581, %vm1582
    %v1584 = vsel %vm1583, %v1576, %v1580
    %v1585 = vand.u32 2147483647, %v1545
    %vm1586 = vcmp.eq.f32.partialorder %v1585, 8.507059e+37
    %v1587 = vand.u32 %v1545, 2147483648
    %v1588 = vor.u32 1.1754944e-38, %v1587
    %v1589 = vsel %vm1586, %v1588, %v1584
    %v1590 = vmul.f32 1.0, %v1589
    %v1591 = vtanh.pop %v1533
    %v1592 = vmul.f32 %v1575, %v1440
    %v1593 = vmul.f32 %v1560, %v1591
    %v1594 = vadd.f32 %v1592, %v1593
    %v1595 = vtanh.pop %v1594
    %v1596 = vmul.f32 %v1590, %v1595
    %1597 = vst [vmem:[#allocation3] sm:$0xff] %v1596
    %1598 = vst [vmem:[#allocation4] sm:$0xff] %v1594
    // Predicated region
    $region42: #{tpu_custom_call.1} parent=1 // pred_check
      %p1599 = pneg %p46
    $region43: #{tpu_custom_call.1} parent=1 // pred_check_branch
      %1601 = sbr.rel (%p1599) target = $region45
    $region44: #{tpu_custom_call.1} parent=1 // pred_region
      %v1602 = vld [vmem:[%s4] sm:$0xff]
      %v1603 = vld [vmem:[%s4 + $0x8] sm:$0xff]
      %v1604 = vld [vmem:[%s4 + $0x10] sm:$0xff]
      %v1605 = vld [vmem:[%s4 + $0x18] sm:$0xff]
      %v1606 = vld [vmem:[%s4 + $0x20] sm:$0xff]
      %v1607 = vld [vmem:[%s4 + $0x28] sm:$0xff]
      %v1608 = vld [vmem:[%s4 + $0x30] sm:$0xff]
      %v1609 = vld [vmem:[%s4 + $0x38] sm:$0xff]
      %v1610 = vld [vmem:[%s4 + $0x40] sm:$0xff]
      %v1611 = vld [vmem:[%s4 + $0x48] sm:$0xff]
      %v1612 = vld [vmem:[%s4 + $0x50] sm:$0xff]
      %v1613 = vld [vmem:[%s4 + $0x58] sm:$0xff]
      %v1614 = vld [vmem:[%s4 + $0x60] sm:$0xff]
      %v1615 = vld [vmem:[%s4 + $0x68] sm:$0xff]
      %v1616 = vld [vmem:[%s4 + $0x70] sm:$0xff]
      %v1617 = vld [vmem:[%s4 + $0x78] sm:$0xff]
      %v1618 = vld [vmem:[%s5] sm:$0x1]
      %v1620 = vperm.slane %v1618, 0
      %1622 = vmatpush.msra.mxu0 %v1617
      %1623 = vmatpush.msra.mxu0 %v1616
      %1624 = vmatpush.msra.mxu0 %v1615
      %1625 = vmatpush.msra.mxu0 %v1614
      %1626 = vmatpush.msra.mxu0 %v1613
      %1627 = vmatpush.msra.mxu0 %v1612
      %1628 = vmatpush.msra.mxu0 %v1611
      %1629 = vmatpush.msra.mxu0 %v1610
      %1630 = vmatpush.msra.mxu0 %v1609
      %1631 = vmatpush.msra.mxu0 %v1608
      %1632 = vmatpush.msra.mxu0 %v1607
      %1633 = vmatpush.msra.mxu0 %v1606
      %1634 = vmatpush.msra.mxu0 %v1605
      %1635 = vmatpush.msra.mxu0 %v1604
      %1636 = vmatpush.msra.mxu0 %v1603
      %1637 = vmatpush.msra.mxu0 %v1602
      %1638 = vmatmul.f32.gmra.mxu0 %v1596
      %v1639 = vpop.f32.mrf.mxu0
      %v1640 = vadd.f32 %v1620, %v1639
      %1641 = vdwg.mxu0
      %1643 = vrot.lane.b32.xlu0 %v1640, 112
      %v1644 = vpop.permute.xlu0 %1643
      %v1646 = vsel %vm78, %v1644, 0.0
      %1647 = vadd.xlane.f32.xlu0 %v1646
      %v1648 = vpop.xlane.xlu0 %1647
      %v1649 = vrcp.pop 16.0
      %v1650 = vmul.f32 16.0, %v1649
      %v1651 = vsub.f32 1.0, %v1650
      %v1652 = vmul.f32 %v1649, %v1651
      %v1653 = vadd.f32 %v1649, %v1652
      %vm1654 = vweird.f32 %v1649
      %v1655 = vsel %vm1654, %v1649, %v1653
      %v1656 = vmul.f32 %v1648, %v1655
      %v1657 = vsub.f32 %v1640, %v1656
      %v1658 = vmul.f32 %v1657, %v1657
      %1660 = vrot.lane.b32.xlu0 %v1658, 112
      %v1661 = vpop.permute.xlu0 %1660
      %v1663 = vsel %vm78, %v1661, 0.0
      %1664 = vadd.xlane.f32.xlu0 %v1663
      %v1665 = vpop.xlane.xlu0 %1664
      %v1666 = vmul.f32 %v1665, %v1655
      %v1667 = vadd.f32 %v1666, 1e-05
      %v1668 = vrsqrt.pop %v1667
      %v1669 = vmul.f32 %v1668, %v1667
      %v1670 = vmul.f32 %v1669, %v1668
      %v1671 = vmul.f32 0.5, %v1670
      %v1672 = vsub.f32 1.5, %v1671
      %v1673 = vmul.f32 %v1668, %v1672
      %vm1674 = vweird.f32 %v1667
      %vm1675 = vweird.f32 %v1668
      %vm1676 = vmor %vm1674, %vm1675
      %v1677 = vsel %vm1676, %v1668, %v1673
      %v1678 = vmul.f32 %v1657, %v1677
      %v1679 = vld [vmem:[%s6] sm:$0x1]
      %v1681 = vperm.slane %v1679, 0
      %1682 = vrot.lane.b32.xlu0 %v1681, 16
      %v1683 = vpop.permute.xlu0 %1682
      %v1685 = vmul.f32 %v1678, %v1683
      %v1686 = vld [vmem:[%s7] sm:$0x1]
      %v1688 = vperm.slane %v1686, 0
      %1689 = vrot.lane.b32.xlu0 %v1688, 16
      %v1690 = vpop.permute.xlu0 %1689
      %v1692 = vadd.f32 %v1685, %v1690
      %1694 = vrot.lane.b32.xlu0 %v1692, 16
      %v1695 = vpop.permute.xlu0 %1694
      %vm1697 = vcmask 261120
      %v1698 = vsel %vm1697, %v1640, %v1695
      %vm1699 = vcmask 392192
      %v1700 = vsel %vm1699, %v1698, 0.0
      %1701 = vst [vmem:[#allocation8] sm:$0xff] %v1700
    $region45: #{tpu_custom_call.1} parent=1 // pred_fallthru
      _
    // Predicated region
    $region46: #{tpu_custom_call.1} parent=1 // pred_check
      _
    $region47: #{tpu_custom_call.1} parent=1 // pred_check_branch
      %1703 = sbr.rel (0) target = $region49
    $region48: #{tpu_custom_call.1} parent=1 // pred_region
      %1705 = vsyncadd [#allocation7], 0
      %s1707 = sshll.u32 [#allocation8], 4
      %s1708 = int_to_ptr.vmem [resolvable:$true] %s1707
      %s1709 = sshll.u32 %s8, 4
      %s1710 = int_to_ptr.hbm [resolvable:$true] %s1709
      %1712 = dma.vmem_to_hbm [thread:$0]  %s1708, 128, %s1710, [#allocation7]
    $region49: #{tpu_custom_call.1} parent=1 // pred_fallthru
      _
    // Predicated region
    $region50: #{tpu_custom_call.1} parent=1 // pred_check
      _
    $region51: #{tpu_custom_call.1} parent=1 // pred_check_branch
      %1714 = sbr.rel (0) target = $region53
    $region52: #{tpu_custom_call.1} parent=1 // pred_region
      %1716 = dma.done [#allocation7], 128
    $region53: #{tpu_custom_call.1} parent=1 // pred_fallthru
      _
    %1717 = vsyncpa [#allocation6], 1
    %1718 = vsyncpa [#allocation7], 1

</llo_original>
